<compile_context>
chip_gen: v7x
topology: tpu7x:2x2x1
jax: 0.10.0
libtpu: 0.0.40
codegen_flags: <defaults>
</compile_context>

<pallas_src>
import jax
import jax.numpy as jnp
from jax.experimental import pallas as pl
from jax.experimental.pallas import tpu as pltpu


def _conv3x3_bn_relu_kernel(x_ref, w_ref, scale_ref, shift_ref, o_ref, xpad_ref):
    # x_ref     : (1, Cin, H, W)        one batch element, NCHW (native dtype)
    # w_ref     : (9, Cout, Cin)        folded 3x3 taps, t = kh*3 + kw
    # scale_ref : (Cout, 1)  f32        folded BatchNorm scale
    # shift_ref : (Cout, 1)  f32        folded BatchNorm shift (incl. avg bias)
    # o_ref     : (1, Cout, H*W)        output, spatial flattened (lane-dense)
    # xpad_ref  : VMEM (Cin, H+2, W+2)  zero-padded input scratch (native dtype)
    _, Cin, H, W = x_ref.shape
    Cout = o_ref.shape[1]
    HW = H * W

    # Zero ONLY the 1-pixel halo: the interior is fully overwritten every step,
    # and a "once at program_id==0" memset would be unsafe under megacore grid
    # sharding (the second core never executes step 0).
    zdt = xpad_ref.dtype
    xpad_ref[:, 0:1, :] = jnp.zeros((Cin, 1, W + 2), zdt)
    xpad_ref[:, H + 1:H + 2, :] = jnp.zeros((Cin, 1, W + 2), zdt)
    xpad_ref[:, :, 0:1] = jnp.zeros((Cin, H + 2, 1), zdt)
    xpad_ref[:, :, W + 1:W + 2] = jnp.zeros((Cin, H + 2, 1), zdt)
    xpad_ref[:, 1:H + 1, 1:W + 1] = x_ref[0]

    # 9 accumulated tap-matmuls (no im2col scratch).  Each tap:
    # (Cout, Cin) @ (Cin, H*W) -> (Cout, H*W), accumulated in f32.
    acc = jnp.zeros((Cout, HW), jnp.float32)
    for kh in range(3):
        for kw in range(3):
            patch = xpad_ref[:, kh:kh + H, kw:kw + W].reshape(Cin, HW)
            acc = acc + jnp.dot(w_ref[kh * 3 + kw], patch,
                                preferred_element_type=jnp.float32)

    # Fused eval-mode BatchNorm (+ avg-branch bias) + ReLU; lane-dense store.
    y = jnp.maximum(acc * scale_ref[...] + shift_ref[...], 0.0)
    o_ref[...] = y.reshape(1, Cout, HW).astype(o_ref.dtype)


def skeleton_strengthening_block5(x_nchw, params, *, stride=1, eps=1e-5):
    """Forward pass of SkeletonStrengtheningBlock5 (inference mode).

    x_nchw: (N, Cin, H, W).  params holds the PyTorch weights:
      w3x3 (Cout,Cin,3,3), w3x1 (Cout,Cin,3,1), w1x3 (Cout,Cin,1,3),
      w1x1 (Cout,Cin,1,1) or None (nn.Identity), w_avg (Cout,Cin,3,3),
      b_avg (Cout,), gamma/beta/mean/var (Cout,) for eval-mode BatchNorm.
    Returns (N, Cout, H, W).
    """
    if stride != 1:
        # TODO(synk): stride > 1 needs strided output indexing in the kernel.
        raise NotImplementedError("only stride=1 is supported")

    w3x3, w3x1, w1x3 = params["w3x3"], params["w3x1"], params["w1x3"]
    w1x1, w_avg, b_avg = params["w1x1"], params["w_avg"], params["b_avg"]
    gamma, beta = params["gamma"], params["beta"]
    mean, var = params["mean"], params["var"]

    Cout, Cin = w3x3.shape[0], w3x3.shape[1]
    N, _, H, W = x_nchw.shape
    HW = H * W

    # ---- exact structural re-parameterization (conv is linear in weights) ----
    w_eff = w3x3.astype(jnp.float32)
    w_eff = w_eff.at[:, :, :, 1].add(w3x1[:, :, :, 0].astype(jnp.float32))   # 3x1 -> mid col
    w_eff = w_eff.at[:, :, 1, :].add(w1x3[:, :, 0, :].astype(jnp.float32))   # 1x3 -> mid row
    if w1x1 is None:                                                         # nn.Identity()
        assert Cin == Cout, "Identity branch requires in_channels == out_channels"
        w_eff = w_eff.at[:, :, 1, 1].add(jnp.eye(Cout, dtype=jnp.float32))
    else:
        w_eff = w_eff.at[:, :, 1, 1].add(w1x1[:, :, 0, 0].astype(jnp.float32))
    w_eff = w_eff + w_avg.astype(jnp.float32)

    # Fold eval-mode BatchNorm (+ avg-branch bias) into per-channel scale/shift.
    scale = (gamma / jnp.sqrt(var + eps)).astype(jnp.float32)                # (Cout,)
    shift = ((b_avg - mean) * scale + beta).astype(jnp.float32)              # (Cout,)

    # Per-tap (Cout, Cin) matrices, t = kh*3 + kw.  Matmul inputs run in the
    # activation dtype (bf16 in -> bf16 MXU), accumulation stays f32 in-kernel.
    w_taps = jnp.transpose(w_eff, (2, 3, 0, 1)).reshape(9, Cout, Cin)
    w_taps = w_taps.astype(x_nchw.dtype)

    itemsize = jnp.dtype(x_nchw.dtype).itemsize
    flops = 2 * N * HW * 9 * Cin * Cout
    bytes_accessed = (N * HW * Cin * itemsize                 # x
                      + 9 * Cin * Cout * itemsize + 2 * Cout * 4  # weights + scale/shift
                      + N * HW * Cout * itemsize)             # output

    # Output spatial dims are flattened so the kernel's store block has last
    # dim H*W (multiple of 128) -> unmasked lane-dense stores even for small
    # Cout; the reshape back to NCHW is free (contiguous).  No transposes.
    # TODO(synk): for large H*W*Cin add a row-tile grid axis (with +-1 row
    # halo) to bound per-step VMEM and give both v7x TensorCores >=2 steps.
    out_flat = pl.pallas_call(
        _conv3x3_bn_relu_kernel,
        out_shape=jax.ShapeDtypeStruct((N, Cout, HW), x_nchw.dtype),
        grid_spec=pltpu.PrefetchScalarGridSpec(
            num_scalar_prefetch=0,
            grid=(N,),
            in_specs=[
                pl.BlockSpec((1, Cin, H, W), lambda n: (n, 0, 0, 0)),
                pl.BlockSpec((9, Cout, Cin), lambda n: (0, 0, 0)),   # VMEM-resident
                pl.BlockSpec((Cout, 1), lambda n: (0, 0)),
                pl.BlockSpec((Cout, 1), lambda n: (0, 0)),
            ],
            out_specs=pl.BlockSpec((1, Cout, HW), lambda n: (n, 0, 0)),
            scratch_shapes=[
                pltpu.VMEM((Cin, H + 2, W + 2), x_nchw.dtype),
            ],
        ),
        compiler_params=pltpu.CompilerParams(
            dimension_semantics=("parallel",)),
        cost_estimate=pl.CostEstimate(
            flops=flops, transcendentals=0, bytes_accessed=bytes_accessed),
    )(x_nchw, w_taps, scale.reshape(Cout, 1), shift.reshape(Cout, 1))

    return out_flat.reshape(N, Cout, H, W)


def _reference(x, params, *, eps=1e-5):
    """Pure-JAX reference: the five branches computed separately, then BN+ReLU."""
    dn = ("NCHW", "OIHW", "NCHW")

    def conv(lhs, w, padding):
        return jax.lax.conv_general_dilated(
            lhs, w, window_strides=(1, 1), padding=padding, dimension_numbers=dn)

    square = conv(x, params["w3x3"], ((1, 1), (1, 1)))
    ver = conv(x, params["w3x1"], ((1, 1), (0, 0)))
    hor = conv(x, params["w1x3"], ((0, 0), (1, 1)))
    avg = conv(x, params["w_avg"], ((1, 1), (1, 1))) \
        + params["b_avg"][None, :, None, None]
    center = x if params["w1x1"] is None else conv(x, params["w1x1"], ((0, 0), (0, 0)))

    z = square + ver + hor + avg + center
    scale = params["gamma"] / jnp.sqrt(params["var"] + eps)
    zn = (z - params["mean"][None, :, None, None]) * scale[None, :, None, None] \
        + params["beta"][None, :, None, None]
    return jnp.maximum(zn, 0.0)


if __name__ == "__main__":
    key = jax.random.PRNGKey(0)
    ks = jax.random.split(key, 10)

    N, Cin, H, W = 2, 4, 16, 16
    Cout = Cin                         # in_channels == out_channels -> Identity branch

    x = jax.random.normal(ks[0], (N, Cin, H, W), dtype=jnp.float32)

    params = dict(
        w3x3=jax.random.normal(ks[1], (Cout, Cin, 3, 3), jnp.float32) * 0.1,
        w3x1=jax.random.normal(ks[2], (Cout, Cin, 3, 1), jnp.float32) * 0.1,
        w1x3=jax.random.normal(ks[3], (Cout, Cin, 1, 3), jnp.float32) * 0.1,
        w1x1=None,                     # nn.Identity() since Cin == Cout
        w_avg=jax.random.normal(ks[4], (Cout, Cin, 3, 3), jnp.float32) * 0.1,
        b_avg=jax.random.normal(ks[5], (Cout,), jnp.float32) * 0.1,
        gamma=1.0 + 0.1 * jax.random.normal(ks[6], (Cout,), jnp.float32),
        beta=0.1 * jax.random.normal(ks[7], (Cout,), jnp.float32),
        mean=0.1 * jax.random.normal(ks[8], (Cout,), jnp.float32),
        var=0.5 + jax.random.uniform(ks[9], (Cout,), jnp.float32),
    )

    out = skeleton_strengthening_block5(x, params)
    out = jax.block_until_ready(out)

    ref = _reference(x, params)
    assert out.shape == ref.shape == (N, Cout, H, W)
    assert jnp.allclose(out, ref, atol=1e-4, rtol=1e-4), \
        float(jnp.max(jnp.abs(out - ref)))

    print("KERNEL_OK")
</pallas_src>

<mosaic_0001>
module attributes {stable_mosaic.version = 11 : i64} {
  func.func @_conv3x3_bn_relu_kernel(%arg0: i32, %arg1: memref<1x4x16x16xf32, #tpu.memory_space<vmem>>, %arg2: memref<9x4x4xf32, #tpu.memory_space<vmem>>, %arg3: memref<4x1xf32, #tpu.memory_space<vmem>>, %arg4: memref<4x1xf32, #tpu.memory_space<vmem>>, %arg5: memref<1x4x256xf32, #tpu.memory_space<vmem>>, %arg6: memref<4x18x18xf32, #tpu.memory_space<vmem>>) attributes {dimension_semantics = [#tpu.dimension_semantics<parallel>], iteration_bounds = array<i64: 2>, scalar_prefetch = 0 : i64, scratch_operands = 1 : i64, tpu.core_type = #tpu.core_type<tc>, window_params = [{transform_indices = @transform_0, window_bounds = array<i64: 1, 4, 16, 16>}, {pipeline_mode = #tpu.pipeline_mode<synchronous>, transform_indices = @transform_1, window_bounds = array<i64: 9, 4, 4>}, {pipeline_mode = #tpu.pipeline_mode<synchronous>, transform_indices = @transform_2, window_bounds = array<i64: 4, 1>}, {pipeline_mode = #tpu.pipeline_mode<synchronous>, transform_indices = @transform_3, window_bounds = array<i64: 4, 1>}, {transform_indices = @transform_4, window_bounds = array<i64: 1, 4, 256>}]} {
    %cst = arith.constant 0.000000e+00 : f32
    %0 = vector.broadcast %cst : f32 to vector<4x1x18xf32>
    %c0 = arith.constant 0 : index
    %c0_0 = arith.constant 0 : index
    %c0_1 = arith.constant 0 : index
    %1 = vector.load %arg6[%c0, %c0_0, %c0_1] : memref<4x18x18xf32, #tpu.memory_space<vmem>>, vector<4x1x18xf32>
    tpu.vector_store %arg6[%c0, %c0_0, %c0_1], %0 {strides = array<i32>} : memref<4x18x18xf32, #tpu.memory_space<vmem>>, vector<4x1x18xf32>,
    %cst_2 = arith.constant 0.000000e+00 : f32
    %2 = vector.broadcast %cst_2 : f32 to vector<4x1x18xf32>
    %c0_3 = arith.constant 0 : index
    %c17 = arith.constant 17 : index
    %c0_4 = arith.constant 0 : index
    %3 = vector.load %arg6[%c0_3, %c17, %c0_4] : memref<4x18x18xf32, #tpu.memory_space<vmem>>, vector<4x1x18xf32>
    tpu.vector_store %arg6[%c0_3, %c17, %c0_4], %2 {strides = array<i32>} : memref<4x18x18xf32, #tpu.memory_space<vmem>>, vector<4x1x18xf32>,
    %cst_5 = arith.constant 0.000000e+00 : f32
    %4 = vector.broadcast %cst_5 : f32 to vector<4x18x1xf32>
    %c0_6 = arith.constant 0 : index
    %c0_7 = arith.constant 0 : index
    %c0_8 = arith.constant 0 : index
    %5 = vector.load %arg6[%c0_6, %c0_7, %c0_8] : memref<4x18x18xf32, #tpu.memory_space<vmem>>, vector<4x18x1xf32>
    tpu.vector_store %arg6[%c0_6, %c0_7, %c0_8], %4 {strides = array<i32>} : memref<4x18x18xf32, #tpu.memory_space<vmem>>, vector<4x18x1xf32>,
    %cst_9 = arith.constant 0.000000e+00 : f32
    %6 = vector.broadcast %cst_9 : f32 to vector<4x18x1xf32>
    %c0_10 = arith.constant 0 : index
    %c0_11 = arith.constant 0 : index
    %c17_12 = arith.constant 17 : index
    %7 = vector.load %arg6[%c0_10, %c0_11, %c17_12] : memref<4x18x18xf32, #tpu.memory_space<vmem>>, vector<4x18x1xf32>
    tpu.vector_store %arg6[%c0_10, %c0_11, %c17_12], %6 {strides = array<i32>} : memref<4x18x18xf32, #tpu.memory_space<vmem>>, vector<4x18x1xf32>,
    %c0_13 = arith.constant 0 : index
    %c0_14 = arith.constant 0 : index
    %c0_15 = arith.constant 0 : index
    %c0_16 = arith.constant 0 : index
    %8 = vector.load %arg1[%c0_13, %c0_14, %c0_15, %c0_16] : memref<1x4x16x16xf32, #tpu.memory_space<vmem>>, vector<1x4x16x16xf32>
    %9 = vector.shape_cast %8 : vector<1x4x16x16xf32> to vector<4x16x16xf32>
    %c0_17 = arith.constant 0 : index
    %c1 = arith.constant 1 : index
    %c1_18 = arith.constant 1 : index
    %10 = vector.load %arg6[%c0_17, %c1, %c1_18] : memref<4x18x18xf32, #tpu.memory_space<vmem>>, vector<4x16x16xf32>
    tpu.vector_store %arg6[%c0_17, %c1, %c1_18], %9 {strides = array<i32>} : memref<4x18x18xf32, #tpu.memory_space<vmem>>, vector<4x16x16xf32>,
    %cst_19 = arith.constant 0.000000e+00 : f32
    %11 = vector.broadcast %cst_19 : f32 to vector<4x256xf32>
    %c0_20 = arith.constant 0 : index
    %c0_21 = arith.constant 0 : index
    %c0_22 = arith.constant 0 : index
    %12 = vector.load %arg6[%c0_20, %c0_21, %c0_22] : memref<4x18x18xf32, #tpu.memory_space<vmem>>, vector<4x16x16xf32>
    %13 = vector.shape_cast %12 : vector<4x16x16xf32> to vector<4x256xf32>
    %c0_23 = arith.constant 0 : index
    %c0_24 = arith.constant 0 : index
    %c0_25 = arith.constant 0 : index
    %14 = vector.load %arg2[%c0_23, %c0_24, %c0_25] : memref<9x4x4xf32, #tpu.memory_space<vmem>>, vector<1x4x4xf32>
    %15 = vector.shape_cast %14 : vector<1x4x4xf32> to vector<4x4xf32>
    %cst_26 = arith.constant dense<0.000000e+00> : vector<4x256xf32>
    %16 = tpu.matmul %15, %13, %cst_26 {dimension_numbers = #tpu.dot_dimension_numbers<[1], [0], [0], [1], [0, 0, 1, 1], [], []>} : vector<4x4xf32>, vector<4x256xf32>, vector<4x256xf32> -> vector<4x256xf32>
    %17 = arith.addf %11, %16 : vector<4x256xf32>
    %c0_27 = arith.constant 0 : index
    %c0_28 = arith.constant 0 : index
    %c1_29 = arith.constant 1 : index
    %18 = vector.load %arg6[%c0_27, %c0_28, %c1_29] : memref<4x18x18xf32, #tpu.memory_space<vmem>>, vector<4x16x16xf32>
    %19 = vector.shape_cast %18 : vector<4x16x16xf32> to vector<4x256xf32>
    %c1_30 = arith.constant 1 : index
    %c0_31 = arith.constant 0 : index
    %c0_32 = arith.constant 0 : index
    %20 = vector.load %arg2[%c1_30, %c0_31, %c0_32] : memref<9x4x4xf32, #tpu.memory_space<vmem>>, vector<1x4x4xf32>
    %21 = vector.shape_cast %20 : vector<1x4x4xf32> to vector<4x4xf32>
    %cst_33 = arith.constant dense<0.000000e+00> : vector<4x256xf32>
    %22 = tpu.matmul %21, %19, %cst_33 {dimension_numbers = #tpu.dot_dimension_numbers<[1], [0], [0], [1], [0, 0, 1, 1], [], []>} : vector<4x4xf32>, vector<4x256xf32>, vector<4x256xf32> -> vector<4x256xf32>
    %23 = arith.addf %17, %22 : vector<4x256xf32>
    %c0_34 = arith.constant 0 : index
    %c0_35 = arith.constant 0 : index
    %c2 = arith.constant 2 : index
    %24 = vector.load %arg6[%c0_34, %c0_35, %c2] : memref<4x18x18xf32, #tpu.memory_space<vmem>>, vector<4x16x16xf32>
    %25 = vector.shape_cast %24 : vector<4x16x16xf32> to vector<4x256xf32>
    %c2_36 = arith.constant 2 : index
    %c0_37 = arith.constant 0 : index
    %c0_38 = arith.constant 0 : index
    %26 = vector.load %arg2[%c2_36, %c0_37, %c0_38] : memref<9x4x4xf32, #tpu.memory_space<vmem>>, vector<1x4x4xf32>
    %27 = vector.shape_cast %26 : vector<1x4x4xf32> to vector<4x4xf32>
    %cst_39 = arith.constant dense<0.000000e+00> : vector<4x256xf32>
    %28 = tpu.matmul %27, %25, %cst_39 {dimension_numbers = #tpu.dot_dimension_numbers<[1], [0], [0], [1], [0, 0, 1, 1], [], []>} : vector<4x4xf32>, vector<4x256xf32>, vector<4x256xf32> -> vector<4x256xf32>
    %29 = arith.addf %23, %28 : vector<4x256xf32>
    %c0_40 = arith.constant 0 : index
    %c1_41 = arith.constant 1 : index
    %c0_42 = arith.constant 0 : index
    %30 = vector.load %arg6[%c0_40, %c1_41, %c0_42] : memref<4x18x18xf32, #tpu.memory_space<vmem>>, vector<4x16x16xf32>
    %31 = vector.shape_cast %30 : vector<4x16x16xf32> to vector<4x256xf32>
    %c3 = arith.constant 3 : index
    %c0_43 = arith.constant 0 : index
    %c0_44 = arith.constant 0 : index
    %32 = vector.load %arg2[%c3, %c0_43, %c0_44] : memref<9x4x4xf32, #tpu.memory_space<vmem>>, vector<1x4x4xf32>
    %33 = vector.shape_cast %32 : vector<1x4x4xf32> to vector<4x4xf32>
    %cst_45 = arith.constant dense<0.000000e+00> : vector<4x256xf32>
    %34 = tpu.matmul %33, %31, %cst_45 {dimension_numbers = #tpu.dot_dimension_numbers<[1], [0], [0], [1], [0, 0, 1, 1], [], []>} : vector<4x4xf32>, vector<4x256xf32>, vector<4x256xf32> -> vector<4x256xf32>
    %35 = arith.addf %29, %34 : vector<4x256xf32>
    %c0_46 = arith.constant 0 : index
    %c1_47 = arith.constant 1 : index
    %c1_48 = arith.constant 1 : index
    %36 = vector.load %arg6[%c0_46, %c1_47, %c1_48] : memref<4x18x18xf32, #tpu.memory_space<vmem>>, vector<4x16x16xf32>
    %37 = vector.shape_cast %36 : vector<4x16x16xf32> to vector<4x256xf32>
    %c4 = arith.constant 4 : index
    %c0_49 = arith.constant 0 : index
    %c0_50 = arith.constant 0 : index
    %38 = vector.load %arg2[%c4, %c0_49, %c0_50] : memref<9x4x4xf32, #tpu.memory_space<vmem>>, vector<1x4x4xf32>
    %39 = vector.shape_cast %38 : vector<1x4x4xf32> to vector<4x4xf32>
    %cst_51 = arith.constant dense<0.000000e+00> : vector<4x256xf32>
    %40 = tpu.matmul %39, %37, %cst_51 {dimension_numbers = #tpu.dot_dimension_numbers<[1], [0], [0], [1], [0, 0, 1, 1], [], []>} : vector<4x4xf32>, vector<4x256xf32>, vector<4x256xf32> -> vector<4x256xf32>
    %41 = arith.addf %35, %40 : vector<4x256xf32>
    %c0_52 = arith.constant 0 : index
    %c1_53 = arith.constant 1 : index
    %c2_54 = arith.constant 2 : index
    %42 = vector.load %arg6[%c0_52, %c1_53, %c2_54] : memref<4x18x18xf32, #tpu.memory_space<vmem>>, vector<4x16x16xf32>
    %43 = vector.shape_cast %42 : vector<4x16x16xf32> to vector<4x256xf32>
    %c5 = arith.constant 5 : index
    %c0_55 = arith.constant 0 : index
    %c0_56 = arith.constant 0 : index
    %44 = vector.load %arg2[%c5, %c0_55, %c0_56] : memref<9x4x4xf32, #tpu.memory_space<vmem>>, vector<1x4x4xf32>
    %45 = vector.shape_cast %44 : vector<1x4x4xf32> to vector<4x4xf32>
    %cst_57 = arith.constant dense<0.000000e+00> : vector<4x256xf32>
    %46 = tpu.matmul %45, %43, %cst_57 {dimension_numbers = #tpu.dot_dimension_numbers<[1], [0], [0], [1], [0, 0, 1, 1], [], []>} : vector<4x4xf32>, vector<4x256xf32>, vector<4x256xf32> -> vector<4x256xf32>
    %47 = arith.addf %41, %46 : vector<4x256xf32>
    %c0_58 = arith.constant 0 : index
    %c2_59 = arith.constant 2 : index
    %c0_60 = arith.constant 0 : index
    %48 = vector.load %arg6[%c0_58, %c2_59, %c0_60] : memref<4x18x18xf32, #tpu.memory_space<vmem>>, vector<4x16x16xf32>
    %49 = vector.shape_cast %48 : vector<4x16x16xf32> to vector<4x256xf32>
    %c6 = arith.constant 6 : index
    %c0_61 = arith.constant 0 : index
    %c0_62 = arith.constant 0 : index
    %50 = vector.load %arg2[%c6, %c0_61, %c0_62] : memref<9x4x4xf32, #tpu.memory_space<vmem>>, vector<1x4x4xf32>
    %51 = vector.shape_cast %50 : vector<1x4x4xf32> to vector<4x4xf32>
    %cst_63 = arith.constant dense<0.000000e+00> : vector<4x256xf32>
    %52 = tpu.matmul %51, %49, %cst_63 {dimension_numbers = #tpu.dot_dimension_numbers<[1], [0], [0], [1], [0, 0, 1, 1], [], []>} : vector<4x4xf32>, vector<4x256xf32>, vector<4x256xf32> -> vector<4x256xf32>
    %53 = arith.addf %47, %52 : vector<4x256xf32>
    %c0_64 = arith.constant 0 : index
    %c2_65 = arith.constant 2 : index
    %c1_66 = arith.constant 1 : index
    %54 = vector.load %arg6[%c0_64, %c2_65, %c1_66] : memref<4x18x18xf32, #tpu.memory_space<vmem>>, vector<4x16x16xf32>
    %55 = vector.shape_cast %54 : vector<4x16x16xf32> to vector<4x256xf32>
    %c7 = arith.constant 7 : index
    %c0_67 = arith.constant 0 : index
    %c0_68 = arith.constant 0 : index
    %56 = vector.load %arg2[%c7, %c0_67, %c0_68] : memref<9x4x4xf32, #tpu.memory_space<vmem>>, vector<1x4x4xf32>
    %57 = vector.shape_cast %56 : vector<1x4x4xf32> to vector<4x4xf32>
    %cst_69 = arith.constant dense<0.000000e+00> : vector<4x256xf32>
    %58 = tpu.matmul %57, %55, %cst_69 {dimension_numbers = #tpu.dot_dimension_numbers<[1], [0], [0], [1], [0, 0, 1, 1], [], []>} : vector<4x4xf32>, vector<4x256xf32>, vector<4x256xf32> -> vector<4x256xf32>
    %59 = arith.addf %53, %58 : vector<4x256xf32>
    %c0_70 = arith.constant 0 : index
    %c2_71 = arith.constant 2 : index
    %c2_72 = arith.constant 2 : index
    %60 = vector.load %arg6[%c0_70, %c2_71, %c2_72] : memref<4x18x18xf32, #tpu.memory_space<vmem>>, vector<4x16x16xf32>
    %61 = vector.shape_cast %60 : vector<4x16x16xf32> to vector<4x256xf32>
    %c8 = arith.constant 8 : index
    %c0_73 = arith.constant 0 : index
    %c0_74 = arith.constant 0 : index
    %62 = vector.load %arg2[%c8, %c0_73, %c0_74] : memref<9x4x4xf32, #tpu.memory_space<vmem>>, vector<1x4x4xf32>
    %63 = vector.shape_cast %62 : vector<1x4x4xf32> to vector<4x4xf32>
    %cst_75 = arith.constant dense<0.000000e+00> : vector<4x256xf32>
    %64 = tpu.matmul %63, %61, %cst_75 {dimension_numbers = #tpu.dot_dimension_numbers<[1], [0], [0], [1], [0, 0, 1, 1], [], []>} : vector<4x4xf32>, vector<4x256xf32>, vector<4x256xf32> -> vector<4x256xf32>
    %65 = arith.addf %59, %64 : vector<4x256xf32>
    %c0_76 = arith.constant 0 : index
    %c0_77 = arith.constant 0 : index
    %66 = vector.load %arg3[%c0_76, %c0_77] : memref<4x1xf32, #tpu.memory_space<vmem>>, vector<4x1xf32>
    %67 = vector.broadcast %66 : vector<4x1xf32> to vector<4x256xf32>
    %68 = arith.mulf %65, %67 : vector<4x256xf32>
    %c0_78 = arith.constant 0 : index
    %c0_79 = arith.constant 0 : index
    %69 = vector.load %arg4[%c0_78, %c0_79] : memref<4x1xf32, #tpu.memory_space<vmem>>, vector<4x1xf32>
    %70 = vector.broadcast %69 : vector<4x1xf32> to vector<4x256xf32>
    %71 = arith.addf %68, %70 : vector<4x256xf32>
    %cst_80 = arith.constant 0.000000e+00 : f32
    %72 = vector.broadcast %cst_80 : f32 to vector<4x256xf32>
    %73 = arith.maximumf %71, %72 : vector<4x256xf32>
    %74 = vector.shape_cast %73 : vector<4x256xf32> to vector<1x4x256xf32>
    %c0_81 = arith.constant 0 : index
    %c0_82 = arith.constant 0 : index
    %c0_83 = arith.constant 0 : index
    %75 = vector.load %arg5[%c0_81, %c0_82, %c0_83] : memref<1x4x256xf32, #tpu.memory_space<vmem>>, vector<1x4x256xf32>
    tpu.vector_store %arg5[%c0_81, %c0_82, %c0_83], %74 {strides = array<i32>} : memref<1x4x256xf32, #tpu.memory_space<vmem>>, vector<1x4x256xf32>,
    return
  }
  func.func @transform_0(%arg0: i32) -> (i32, i32, i32, i32) {
    %c0_i32 = arith.constant 0 : i32
    %c0_i32_0 = arith.constant 0 : i32
    %c0_i32_1 = arith.constant 0 : i32
    %c0_i32_2 = arith.constant 0 : i32
    return %arg0, %c0_i32, %c0_i32_0, %c0_i32_1 : i32, i32, i32, i32
  }
  func.func @transform_1(%arg0: i32) -> (i32, i32, i32) {
    %c0_i32 = arith.constant 0 : i32
    %c0_i32_0 = arith.constant 0 : i32
    %c0_i32_1 = arith.constant 0 : i32
    %c0_i32_2 = arith.constant 0 : i32
    return %c0_i32, %c0_i32_0, %c0_i32_1 : i32, i32, i32
  }
  func.func @transform_2(%arg0: i32) -> (i32, i32) {
    %c0_i32 = arith.constant 0 : i32
    %c0_i32_0 = arith.constant 0 : i32
    %c0_i32_1 = arith.constant 0 : i32
    return %c0_i32, %c0_i32_0 : i32, i32
  }
  func.func @transform_3(%arg0: i32) -> (i32, i32) {
    %c0_i32 = arith.constant 0 : i32
    %c0_i32_0 = arith.constant 0 : i32
    %c0_i32_1 = arith.constant 0 : i32
    return %c0_i32, %c0_i32_0 : i32, i32
  }
  func.func @transform_4(%arg0: i32) -> (i32, i32, i32) {
    %c0_i32 = arith.constant 0 : i32
    %c0_i32_0 = arith.constant 0 : i32
    %c0_i32_1 = arith.constant 0 : i32
    return %arg0, %c0_i32, %c0_i32_0 : i32, i32, i32
  }
}

</mosaic_0001>

<llo_original>
// kernel: tpu_custom_call.1
$region0: #{tpu_custom_call.1}
  #allocation0 [shape = 'u32[]', space=smem, size = 0x4, offset = 0x4, fixed_abs, tag = 'smem constant byte address 0x4 - core index']
  #allocation1 [shape = 'u32[144,128]{1,0:T(1,128)}', space=vmem, size = 0x12000, scoped, tag = 'internal scratch']
  #allocation2 [shape = 'f32[4,18,18]{2,1,0:T(8,128)}', space=vmem, size = 0xc000, scoped, tag = 'scratch operand']
  %s0 = inlined_call_operand.hbm [shape: f32[2,4,16,16], index: 0, kind: input, shape index: {}]
  %s1 = inlined_call_operand.vmem [shape: f32[9,4,4], index: 1, kind: input, shape index: {}]
  %s2 = inlined_call_operand.vmem [shape: f32[4,1], index: 2, kind: input, shape index: {}]
  %s3 = inlined_call_operand.vmem [shape: f32[4,1], index: 3, kind: input, shape index: {}]
  %s4 = inlined_call_operand.hbm [shape: f32[2,4,256], index: 4, kind: output, shape index: {}]
  %s5 = sld [smem:[#allocation0]]
  $region53: #{tpu_custom_call.1} parent=0
    _
  %s7 = ssub.s32 1, %s5
  %s8 = scalar_select 0, %s7, %s5
  $region1: #{tpu_custom_call.1} parent=0
    #allocation3 [shape = 'u8[65536]{0}', space=vmem, size = 0x10000, scoped, tag = 'input window, operand 0']
    #allocation4 [shape = 's32[2]{0}', space=sflag, size = 0x8, scoped, tag = 'scoped memory for tpu_custom_call.1']
    #allocation5 [shape = 's32[2]{0}', space=sflag, size = 0x8, scoped, tag = 'scoped memory for tpu_custom_call.1']
    #allocation6 [shape = 'u8[8192]{0}', space=vmem, size = 0x2000, scoped, tag = 'output window, operand 0']
    %9 = vsyncpa [#allocation4], 0
    %s10 = scalar_lea.sflag [#allocation4], 1
    %11 = vsyncpa %s10, 0
    %12 = vsyncpa [#allocation5], 0
    %s13 = scalar_lea.sflag [#allocation5], 1
    %14 = vsyncpa %s13, 0
    loop: start=0, step=1, limit=4
    $region2: #{tpu_custom_call.1} parent=1 // loop_pre_header
      _
    $region3: #{tpu_custom_call.1} parent=1 // loop_header
      %s16 = sphi 0, %s20
      %p17 = scmp.ge.s32.totalorder %s16, 4
      %s26 = sphi 0, %s28
      %s29 = sphi 0, %s26
      %s30 = sphi 0, %s29
      %s46 = sphi 0, %s30
      %s50 = sphi 0, %s50
      %s52 = sphi 0, %s50
      %s53 = sphi 0, %s52
      %s67 = sphi 0, %s53
      %s71 = sphi 0, %s71
      %s73 = sphi 0, %s71
      %s74 = sphi 0, %s73
      %s88 = sphi 0, %s74
      %s92 = sphi 0, %s92
      %s94 = sphi 0, %s92
      %s95 = sphi 0, %s94
      %s109 = sphi 0, %s95
      %s115 = sphi 0, %s117
      %s118 = sphi 0, %s115
      %s119 = sphi 0, %s118
      %s135 = sphi 0, %s119
    $region4: #{tpu_custom_call.1} parent=1 // loop_header_branch
      %19 = sbr.rel (%p17) target = $region8
    $region5: #{tpu_custom_call.1} parent=1 // loop_body
      %s21 = ssub.s32 %s16, 1
      %s22 = ssub.s32 %s16, 2
      %s23 = sadd.s32 %s16, 1
      %s24 = ssub.s32 %s16, %s23
      %p25 = scmp.eq.s32.totalorder %s24, 0
      %s27 = sadd.s32 %s26, 1
      %s28 = scalar_select %p25, %s26, %s27
      %p31 = pneg %p25
      %p32 = scmp.eq.s32.totalorder %s16, 1
      %p33 = por %p31, %p32
      %p34 = scmp.ne.s32.totalorder %s26, %s29
      %p35 = scmp.eq.s32.totalorder %s16, 0
      %p36 = por %p34, %p35
      %p37 = scmp.ne.s32.totalorder %s26, %s29
      %p38 = scmp.eq.s32.totalorder %s21, 1
      %p39 = por %p37, %p38
      %p40 = scmp.ne.s32.totalorder %s29, %s30
      %p41 = scmp.eq.s32.totalorder %s21, 0
      %p42 = por %p40, %p41
      %p43 = scmp.ne.s32.totalorder %s29, %s30
      %p44 = scmp.eq.s32.totalorder %s22, 1
      %p45 = por %p43, %p44
      %p47 = scmp.ne.s32.totalorder %s30, %s46
      %p48 = scmp.eq.s32.totalorder %s22, 0
      %p49 = por %p47, %p48
      %s51 = sadd.s32 %s50, 1
      %p54 = scmp.eq.s32.totalorder %s16, 1
      %p55 = scmp.ne.s32.totalorder %s50, %s52
      %p56 = scmp.eq.s32.totalorder %s16, 0
      %p57 = por %p55, %p56
      %p58 = scmp.ne.s32.totalorder %s50, %s52
      %p59 = scmp.eq.s32.totalorder %s21, 1
      %p60 = por %p58, %p59
      %p61 = scmp.ne.s32.totalorder %s52, %s53
      %p62 = scmp.eq.s32.totalorder %s21, 0
      %p63 = por %p61, %p62
      %p64 = scmp.ne.s32.totalorder %s52, %s53
      %p65 = scmp.eq.s32.totalorder %s22, 1
      %p66 = por %p64, %p65
      %p68 = scmp.ne.s32.totalorder %s53, %s67
      %p69 = scmp.eq.s32.totalorder %s22, 0
      %p70 = por %p68, %p69
      %s72 = sadd.s32 %s71, 1
      %p75 = scmp.eq.s32.totalorder %s16, 1
      %p76 = scmp.ne.s32.totalorder %s71, %s73
      %p77 = scmp.eq.s32.totalorder %s16, 0
      %p78 = por %p76, %p77
      %p79 = scmp.ne.s32.totalorder %s71, %s73
      %p80 = scmp.eq.s32.totalorder %s21, 1
      %p81 = por %p79, %p80
      %p82 = scmp.ne.s32.totalorder %s73, %s74
      %p83 = scmp.eq.s32.totalorder %s21, 0
      %p84 = por %p82, %p83
      %p85 = scmp.ne.s32.totalorder %s73, %s74
      %p86 = scmp.eq.s32.totalorder %s22, 1
      %p87 = por %p85, %p86
      %p89 = scmp.ne.s32.totalorder %s74, %s88
      %p90 = scmp.eq.s32.totalorder %s22, 0
      %p91 = por %p89, %p90
      %s93 = sadd.s32 %s92, 1
      %p96 = scmp.eq.s32.totalorder %s16, 1
      %p97 = scmp.ne.s32.totalorder %s92, %s94
      %p98 = scmp.eq.s32.totalorder %s16, 0
      %p99 = por %p97, %p98
      %p100 = scmp.ne.s32.totalorder %s92, %s94
      %p101 = scmp.eq.s32.totalorder %s21, 1
      %p102 = por %p100, %p101
      %p103 = scmp.ne.s32.totalorder %s94, %s95
      %p104 = scmp.eq.s32.totalorder %s21, 0
      %p105 = por %p103, %p104
      %p106 = scmp.ne.s32.totalorder %s94, %s95
      %p107 = scmp.eq.s32.totalorder %s22, 1
      %p108 = por %p106, %p107
      %p110 = scmp.ne.s32.totalorder %s95, %s109
      %p111 = scmp.eq.s32.totalorder %s22, 0
      %p112 = por %p110, %p111
      %s113 = ssub.s32 %s16, %s23
      %p114 = scmp.eq.s32.totalorder %s113, 0
      %s116 = sadd.s32 %s115, 1
      %s117 = scalar_select %p114, %s115, %s116
      %p120 = pneg %p114
      %p121 = scmp.eq.s32.totalorder %s16, 1
      %p122 = por %p120, %p121
      %p123 = scmp.ne.s32.totalorder %s115, %s118
      %p124 = scmp.eq.s32.totalorder %s16, 0
      %p125 = por %p123, %p124
      %p126 = scmp.ne.s32.totalorder %s115, %s118
      %p127 = scmp.eq.s32.totalorder %s21, 1
      %p128 = por %p126, %p127
      %p129 = scmp.ne.s32.totalorder %s118, %s119
      %p130 = scmp.eq.s32.totalorder %s21, 0
      %p131 = por %p129, %p130
      %p132 = scmp.ne.s32.totalorder %s118, %s119
      %p133 = scmp.eq.s32.totalorder %s22, 1
      %p134 = por %p132, %p133
      %p136 = scmp.ne.s32.totalorder %s119, %s135
      %p137 = scmp.eq.s32.totalorder %s22, 0
      %p138 = por %p136, %p137
      %p139 = scmp.le.s32.totalorder 1, %s16
      %p140 = scmp.lt.s32.totalorder %s16, 3
      %p141 = pnand %p139, %p140
      %p142 = pneg %p141
      // Predicated region
      $region9: #{tpu_custom_call.1} parent=5 // pred_check
        _
      $region10: #{tpu_custom_call.1} parent=5 // pred_check_branch
        %144 = sbr.rel (%p141) target = $region12
      $region11: #{tpu_custom_call.1} parent=5 // pred_region
        %s145 = ssub.s32 %s16, 1
        // Predicated region
        $region13: #{tpu_custom_call.1} parent=11 // pred_check
          %p146 = pneg %p63
        $region14: #{tpu_custom_call.1} parent=11 // pred_check_branch
          %148 = sbr.rel (%p146) target = $region16
        $region15: #{tpu_custom_call.1} parent=11 // pred_region
          _
        $region16: #{tpu_custom_call.1} parent=11 // pred_fallthru
          _
        // Predicated region
        $region17: #{tpu_custom_call.1} parent=11 // pred_check
          %p149 = pneg %p84
        $region18: #{tpu_custom_call.1} parent=11 // pred_check_branch
          %151 = sbr.rel (%p149) target = $region20
        $region19: #{tpu_custom_call.1} parent=11 // pred_region
          _
        $region20: #{tpu_custom_call.1} parent=11 // pred_fallthru
          _
        // Predicated region
        $region21: #{tpu_custom_call.1} parent=11 // pred_check
          %p152 = pneg %p105
        $region22: #{tpu_custom_call.1} parent=11 // pred_check_branch
          %154 = sbr.rel (%p152) target = $region24
        $region23: #{tpu_custom_call.1} parent=11 // pred_region
          _
        $region24: #{tpu_custom_call.1} parent=11 // pred_fallthru
          _
      $region12: #{tpu_custom_call.1} parent=5 // pred_fallthru
        _
      %p155 = scmp.lt.s32.totalorder %s16, 2
      // Predicated region
      $region25: #{tpu_custom_call.1} parent=5 // pred_check
        %p156 = pneg %p155
      $region26: #{tpu_custom_call.1} parent=5 // pred_check_branch
        %158 = sbr.rel (%p156) target = $region28
      $region27: #{tpu_custom_call.1} parent=5 // pred_region
        // Predicated region
        $region29: #{tpu_custom_call.1} parent=27 // pred_check
          %p159 = pneg %p36
        $region30: #{tpu_custom_call.1} parent=27 // pred_check_branch
          %161 = sbr.rel (%p159) target = $region32
        $region31: #{tpu_custom_call.1} parent=27 // pred_region
          %s162 = sand.u32 %s26, 1
          %s163 = scalar_lea.sflag [#allocation4], %s162
          %s164 = sand.u32 %s26, 1
          %s165 = smul.addr %s164, 64
          %s166 = scalar_lea.vmem [#allocation3], %s165
          %s168 = ssub.s32 1024, 1024
          %169 = vsyncadd %s163, %s168
          %s170 = smul.addr %s16, 8
          %s171 = smul.addr %s170, 128
          %s172 = scalar_lea.hbm %s0, %s171
          %s173 = sshll.u32 %s166, 4
          %s174 = int_to_ptr.vmem [resolvable:$true] %s173
          %179 = dma.hbm_to_vmem [thread:$0]  %s172, 1024, %s174, %s163, 128, 128, 8
        $region32: #{tpu_custom_call.1} parent=27 // pred_fallthru
          _
      $region28: #{tpu_custom_call.1} parent=5 // pred_fallthru
        _
      %p180 = scmp.le.s32.totalorder 1, %s16
      %p181 = scmp.lt.s32.totalorder %s16, 3
      %p182 = pnand %p180, %p181
      %p183 = pneg %p182
      // Predicated region
      $region33: #{tpu_custom_call.1} parent=5 // pred_check
        _
      $region34: #{tpu_custom_call.1} parent=5 // pred_check_branch
        %185 = sbr.rel (%p182) target = $region36
      $region35: #{tpu_custom_call.1} parent=5 // pred_region
        %s186 = ssub.s32 %s16, 1
        %s187 = sand.u32 %s29, 1
        %s188 = scalar_lea.sflag [#allocation4], %s187
        %s189 = sand.u32 %s29, 1
        %s190 = smul.addr %s189, 64
        %s191 = scalar_lea.vmem [#allocation3], %s190
        // Predicated region
        $region37: #{tpu_custom_call.1} parent=35 // pred_check
          %p192 = pneg %p42
        $region38: #{tpu_custom_call.1} parent=35 // pred_check_branch
          %194 = sbr.rel (%p192) target = $region40
        $region39: #{tpu_custom_call.1} parent=35 // pred_region
          %195 = dma.done %s188, 1024
        $region40: #{tpu_custom_call.1} parent=35 // pred_fallthru
          _
        %s196 = sand.u32 %s29, 1
        %s197 = scalar_lea.sflag [#allocation4], %s196
        %s198 = sand.u32 %s29, 1
        %s199 = smul.addr %s198, 64
        %s200 = scalar_lea.vmem [#allocation3], %s199
        %p201 = pneg %p42
        %p202 = pneg %p39
        %p203 = pneg %p63
        %p204 = pneg %p60
        %p205 = pneg %p84
        %p206 = pneg %p81
        %p207 = pneg %p105
        %p208 = pneg %p102
        %p209 = pneg %p131
        %p210 = pneg %p128
        %s211 = sand.u32 %s118, 1
        %s212 = scalar_lea.sflag [#allocation5], %s211
        %s213 = sand.u32 %s118, 1
        %s214 = smul.addr %s213, 8
        %s215 = scalar_lea.vmem [#allocation6], %s214
        %vm216 = vcmask 139264
        %217 = vst.msk [vmem:[#allocation2] sm:$0x1] %vm216, 0.0
        %218 = vst.msk [vmem:[#allocation2 + $0x18] sm:$0x1] %vm216, 0.0
        %219 = vst.msk [vmem:[#allocation2 + $0x30] sm:$0x1] %vm216, 0.0
        %220 = vst.msk [vmem:[#allocation2 + $0x48] sm:$0x1] %vm216, 0.0
        %221 = vst.msk [vmem:[#allocation2 + $0x11] sm:$0x1] %vm216, 0.0
        %222 = vst.msk [vmem:[#allocation2 + $0x29] sm:$0x1] %vm216, 0.0
        %223 = vst.msk [vmem:[#allocation2 + $0x41] sm:$0x1] %vm216, 0.0
        %224 = vst.msk [vmem:[#allocation2 + $0x59] sm:$0x1] %vm216, 0.0
        %vm225 = vcmask 7168
        %226 = vst.msk [vmem:[#allocation2] sm:$0xff] %vm225, 0.0
        %227 = vst.msk [vmem:[#allocation2 + $0x8] sm:$0xff] %vm225, 0.0
        %vm228 = vcmask 1024
        %229 = vst.msk [vmem:[#allocation2 + $0x10] sm:$0x3] %vm228, 0.0
        %230 = vst.msk [vmem:[#allocation2 + $0x18] sm:$0xff] %vm225, 0.0
        %231 = vst.msk [vmem:[#allocation2 + $0x20] sm:$0xff] %vm225, 0.0
        %232 = vst.msk [vmem:[#allocation2 + $0x28] sm:$0x3] %vm228, 0.0
        %233 = vst.msk [vmem:[#allocation2 + $0x30] sm:$0xff] %vm225, 0.0
        %234 = vst.msk [vmem:[#allocation2 + $0x38] sm:$0xff] %vm225, 0.0
        %235 = vst.msk [vmem:[#allocation2 + $0x40] sm:$0x3] %vm228, 0.0
        %236 = vst.msk [vmem:[#allocation2 + $0x48] sm:$0xff] %vm225, 0.0
        %237 = vst.msk [vmem:[#allocation2 + $0x50] sm:$0xff] %vm225, 0.0
        %238 = vst.msk [vmem:[#allocation2 + $0x58] sm:$0x3] %vm228, 0.0
        %vm239 = vcmask 146568
        %240 = vst.msk [vmem:[#allocation2] sm:$0xff] %vm239, 0.0
        %241 = vst.msk [vmem:[#allocation2 + $0x8] sm:$0xff] %vm239, 0.0
        %vm242 = vcmask 140424
        %243 = vst.msk [vmem:[#allocation2 + $0x10] sm:$0x3] %vm242, 0.0
        %244 = vst.msk [vmem:[#allocation2 + $0x18] sm:$0xff] %vm239, 0.0
        %245 = vst.msk [vmem:[#allocation2 + $0x20] sm:$0xff] %vm239, 0.0
        %246 = vst.msk [vmem:[#allocation2 + $0x28] sm:$0x3] %vm242, 0.0
        %247 = vst.msk [vmem:[#allocation2 + $0x30] sm:$0xff] %vm239, 0.0
        %248 = vst.msk [vmem:[#allocation2 + $0x38] sm:$0xff] %vm239, 0.0
        %249 = vst.msk [vmem:[#allocation2 + $0x40] sm:$0x3] %vm242, 0.0
        %250 = vst.msk [vmem:[#allocation2 + $0x48] sm:$0xff] %vm239, 0.0
        %251 = vst.msk [vmem:[#allocation2 + $0x50] sm:$0xff] %vm239, 0.0
        %252 = vst.msk [vmem:[#allocation2 + $0x58] sm:$0x3] %vm242, 0.0
        %v253 = vld [vmem:[%s191] sm:$0xff]
        %v254 = vld [vmem:[%s191 + $0x8] sm:$0xff]
        %v255 = vld [vmem:[%s191 + $0x10] sm:$0xff]
        %v256 = vld [vmem:[%s191 + $0x18] sm:$0xff]
        %v257 = vld [vmem:[%s191 + $0x20] sm:$0xff]
        %v258 = vld [vmem:[%s191 + $0x28] sm:$0xff]
        %v259 = vld [vmem:[%s191 + $0x30] sm:$0xff]
        %v260 = vld [vmem:[%s191 + $0x38] sm:$0xff]
        %269 = vrot.lane.b32.xlu0 %v253, 1
        %v270 = vpop.permute.xlu0 %269
        %271 = vrot.lane.b32.xlu0 %v254, 1
        %v272 = vpop.permute.xlu0 %271
        %273 = vrot.lane.b32.xlu0 %v255, 1
        %v274 = vpop.permute.xlu0 %273
        %275 = vrot.lane.b32.xlu0 %v256, 1
        %v276 = vpop.permute.xlu0 %275
        %277 = vrot.lane.b32.xlu0 %v257, 1
        %v278 = vpop.permute.xlu0 %277
        %279 = vrot.lane.b32.xlu0 %v258, 1
        %v280 = vpop.permute.xlu0 %279
        %281 = vrot.lane.b32.xlu0 %v259, 1
        %v282 = vpop.permute.xlu0 %281
        %283 = vrot.lane.b32.xlu0 %v260, 1
        %v284 = vpop.permute.xlu0 %283
        %vm293 = vcmask 138248
        %294 = vst.msk [vmem:[#allocation2 + $0x1] sm:$0xff] %vm293, %v270
        %295 = vst.msk [vmem:[#allocation2 + $0x9] sm:$0xff] %vm293, %v272
        %296 = vst.msk [vmem:[#allocation2 + $0x19] sm:$0xff] %vm293, %v274
        %297 = vst.msk [vmem:[#allocation2 + $0x21] sm:$0xff] %vm293, %v276
        %298 = vst.msk [vmem:[#allocation2 + $0x31] sm:$0xff] %vm293, %v278
        %299 = vst.msk [vmem:[#allocation2 + $0x39] sm:$0xff] %vm293, %v280
        %300 = vst.msk [vmem:[#allocation2 + $0x49] sm:$0xff] %vm293, %v282
        %301 = vst.msk [vmem:[#allocation2 + $0x51] sm:$0xff] %vm293, %v284
        %v302 = vld [vmem:[#allocation2] sm:$0xff]
        %v303 = vld [vmem:[#allocation2 + $0x8] sm:$0xff]
        %v304 = vld [vmem:[#allocation2 + $0x18] sm:$0xff]
        %v305 = vld [vmem:[#allocation2 + $0x20] sm:$0xff]
        %v306 = vld [vmem:[#allocation2 + $0x30] sm:$0xff]
        %v307 = vld [vmem:[#allocation2 + $0x38] sm:$0xff]
        %v308 = vld [vmem:[#allocation2 + $0x48] sm:$0xff]
        %v309 = vld [vmem:[#allocation2 + $0x50] sm:$0xff]
        %v310 = vcombine.low %v302, %v306
        %v311 = vcombine.high %v302, %v306
        %v313 = vunpack.c.l.s4 1983009808
        %v314 = vunpack.c.0.s8 %v313
        %v315 = vlaneseq
        %v316 = vshrl.u32 %v315, 7
        %v317 = vsub.s32 %v314, %v316
        %v318 = vrot.slane %v310, %v317
        %v320 = vunpack.c.l.s4 1983009808
        %v321 = vunpack.c.0.s8 %v320
        %v322 = vlaneseq
        %v323 = vshrl.u32 %v322, 7
        %v324 = vsub.s32 %v321, %v323
        %v325 = vrot.slane %v311, %v324
        %v326 = vcombine.low %v304, %v308
        %v327 = vcombine.high %v304, %v308
        %v329 = vunpack.c.l.s4 1983009808
        %v330 = vunpack.c.0.s8 %v329
        %v331 = vlaneseq
        %v332 = vshrl.u32 %v331, 7
        %v333 = vsub.s32 %v330, %v332
        %v334 = vrot.slane %v326, %v333
        %v336 = vunpack.c.l.s4 1983009808
        %v337 = vunpack.c.0.s8 %v336
        %v338 = vlaneseq
        %v339 = vshrl.u32 %v338, 7
        %v340 = vsub.s32 %v337, %v339
        %v341 = vrot.slane %v327, %v340
        %v342 = vcombine.low %v318, %v334
        %v343 = vcombine.high %v318, %v334
        %v345 = vunpack.c.l.s4 1934713408
        %v346 = vunpack.c.0.s8 %v345
        %v347 = vlaneseq
        %v348 = vshrl.u32 %v347, 7
        %v349 = vsub.s32 %v346, %v348
        %v350 = vrot.slane %v342, %v349
        %v352 = vunpack.c.l.s4 1934713408
        %v353 = vunpack.c.0.s8 %v352
        %v354 = vlaneseq
        %v355 = vshrl.u32 %v354, 7
        %v356 = vsub.s32 %v353, %v355
        %v357 = vrot.slane %v343, %v356
        %v358 = vcombine.low %v325, %v341
        %v359 = vcombine.high %v325, %v341
        %v361 = vunpack.c.l.s4 1934713408
        %v362 = vunpack.c.0.s8 %v361
        %v363 = vlaneseq
        %v364 = vshrl.u32 %v363, 7
        %v365 = vsub.s32 %v362, %v364
        %v366 = vrot.slane %v358, %v365
        %v368 = vunpack.c.l.s4 1934713408
        %v369 = vunpack.c.0.s8 %v368
        %v370 = vlaneseq
        %v371 = vshrl.u32 %v370, 7
        %v372 = vsub.s32 %v369, %v371
        %v373 = vrot.slane %v359, %v372
        %v374 = vcombine.high %v350, 0.0
        %v375 = vcombine.high %v357, 0.0
        %v376 = vcombine.high %v366, 0.0
        %v377 = vcombine.high %v373, 0.0
        %v378 = vcombine.low %v303, %v307
        %v379 = vcombine.high %v303, %v307
        %v381 = vunpack.c.l.s4 1983009808
        %v382 = vunpack.c.0.s8 %v381
        %v383 = vlaneseq
        %v384 = vshrl.u32 %v383, 7
        %v385 = vsub.s32 %v382, %v384
        %v386 = vrot.slane %v378, %v385
        %v388 = vunpack.c.l.s4 1983009808
        %v389 = vunpack.c.0.s8 %v388
        %v390 = vlaneseq
        %v391 = vshrl.u32 %v390, 7
        %v392 = vsub.s32 %v389, %v391
        %v393 = vrot.slane %v379, %v392
        %v394 = vcombine.low %v305, %v309
        %v395 = vcombine.high %v305, %v309
        %v397 = vunpack.c.l.s4 1983009808
        %v398 = vunpack.c.0.s8 %v397
        %v399 = vlaneseq
        %v400 = vshrl.u32 %v399, 7
        %v401 = vsub.s32 %v398, %v400
        %v402 = vrot.slane %v394, %v401
        %v404 = vunpack.c.l.s4 1983009808
        %v405 = vunpack.c.0.s8 %v404
        %v406 = vlaneseq
        %v407 = vshrl.u32 %v406, 7
        %v408 = vsub.s32 %v405, %v407
        %v409 = vrot.slane %v395, %v408
        %v410 = vcombine.low %v386, %v402
        %v411 = vcombine.high %v386, %v402
        %v413 = vunpack.c.l.s4 1934713408
        %v414 = vunpack.c.0.s8 %v413
        %v415 = vlaneseq
        %v416 = vshrl.u32 %v415, 7
        %v417 = vsub.s32 %v414, %v416
        %v418 = vrot.slane %v410, %v417
        %v420 = vunpack.c.l.s4 1934713408
        %v421 = vunpack.c.0.s8 %v420
        %v422 = vlaneseq
        %v423 = vshrl.u32 %v422, 7
        %v424 = vsub.s32 %v421, %v423
        %v425 = vrot.slane %v411, %v424
        %v426 = vcombine.low %v393, %v409
        %v427 = vcombine.high %v393, %v409
        %v429 = vunpack.c.l.s4 1934713408
        %v430 = vunpack.c.0.s8 %v429
        %v431 = vlaneseq
        %v432 = vshrl.u32 %v431, 7
        %v433 = vsub.s32 %v430, %v432
        %v434 = vrot.slane %v426, %v433
        %v436 = vunpack.c.l.s4 1934713408
        %v437 = vunpack.c.0.s8 %v436
        %v438 = vlaneseq
        %v439 = vshrl.u32 %v438, 7
        %v440 = vsub.s32 %v437, %v439
        %v441 = vrot.slane %v427, %v440
        %v442 = vcombine.high %v418, 0.0
        %v443 = vcombine.high %v425, 0.0
        %v444 = vcombine.high %v434, 0.0
        %v445 = vcombine.high %v441, 0.0
        %447 = vrot.lane.b32.xlu0 %v374, 16
        %v448 = vpop.permute.xlu0 %447
        %451 = vrot.lane.b32.xlu0 %v357, 32
        %v452 = vpop.permute.xlu0 %451
        %455 = vrot.lane.b32.xlu0 %v375, 48
        %v456 = vpop.permute.xlu0 %455
        %459 = vrot.lane.b32.xlu0 %v366, 64
        %v460 = vpop.permute.xlu0 %459
        %463 = vrot.lane.b32.xlu0 %v376, 80
        %v464 = vpop.permute.xlu0 %463
        %467 = vrot.lane.b32.xlu0 %v373, 96
        %v468 = vpop.permute.xlu0 %467
        %471 = vrot.lane.b32.xlu0 %v377, 112
        %v472 = vpop.permute.xlu0 %471
        %475 = vrot.lane.b32.xlu0 %v442, 16
        %v476 = vpop.permute.xlu0 %475
        %479 = vrot.lane.b32.xlu0 %v425, 32
        %v480 = vpop.permute.xlu0 %479
        %483 = vrot.lane.b32.xlu0 %v443, 48
        %v484 = vpop.permute.xlu0 %483
        %487 = vrot.lane.b32.xlu0 %v434, 64
        %v488 = vpop.permute.xlu0 %487
        %491 = vrot.lane.b32.xlu0 %v444, 80
        %v492 = vpop.permute.xlu0 %491
        %495 = vrot.lane.b32.xlu0 %v441, 96
        %v496 = vpop.permute.xlu0 %495
        %499 = vrot.lane.b32.xlu0 %v445, 112
        %v500 = vpop.permute.xlu0 %499
        %vm502 = vcmask 130048
        %v503 = vsel %vm502, %v350, %v448
        %vm504 = vcmask 261120
        %v505 = vsel %vm504, %v503, %v452
        %vm506 = vcmask 392192
        %v507 = vsel %vm506, %v505, %v456
        %vm508 = vcmask 523264
        %v509 = vsel %vm508, %v507, %v460
        %vm510 = vcmask 654336
        %v511 = vsel %vm510, %v509, %v464
        %vm512 = vcmask 785408
        %v513 = vsel %vm512, %v511, %v468
        %vm514 = vcmask 916480
        %v515 = vsel %vm514, %v513, %v472
        %v516 = vsel %vm502, %v418, %v476
        %v517 = vsel %vm504, %v516, %v480
        %v518 = vsel %vm506, %v517, %v484
        %v519 = vsel %vm508, %v518, %v488
        %v520 = vsel %vm510, %v519, %v492
        %v521 = vsel %vm512, %v520, %v496
        %v522 = vsel %vm514, %v521, %v500
        %v523 = vld [vmem:[%s1] sm:$0xf]
        %532 = vrot.lane.b32.xlu0 %v302, 127
        %v533 = vpop.permute.xlu0 %532
        %534 = vrot.lane.b32.xlu0 %v303, 127
        %v535 = vpop.permute.xlu0 %534
        %536 = vrot.lane.b32.xlu0 %v304, 127
        %v537 = vpop.permute.xlu0 %536
        %538 = vrot.lane.b32.xlu0 %v305, 127
        %v539 = vpop.permute.xlu0 %538
        %540 = vrot.lane.b32.xlu0 %v306, 127
        %v541 = vpop.permute.xlu0 %540
        %542 = vrot.lane.b32.xlu0 %v307, 127
        %v543 = vpop.permute.xlu0 %542
        %544 = vrot.lane.b32.xlu0 %v308, 127
        %v545 = vpop.permute.xlu0 %544
        %546 = vrot.lane.b32.xlu0 %v309, 127
        %v547 = vpop.permute.xlu0 %546
        %v556 = vcombine.low %v533, %v541
        %v557 = vcombine.high %v533, %v541
        %v559 = vunpack.c.l.s4 1983009808
        %v560 = vunpack.c.0.s8 %v559
        %v561 = vlaneseq
        %v562 = vshrl.u32 %v561, 7
        %v563 = vsub.s32 %v560, %v562
        %v564 = vrot.slane %v556, %v563
        %v566 = vunpack.c.l.s4 1983009808
        %v567 = vunpack.c.0.s8 %v566
        %v568 = vlaneseq
        %v569 = vshrl.u32 %v568, 7
        %v570 = vsub.s32 %v567, %v569
        %v571 = vrot.slane %v557, %v570
        %v572 = vcombine.low %v537, %v545
        %v573 = vcombine.high %v537, %v545
        %v575 = vunpack.c.l.s4 1983009808
        %v576 = vunpack.c.0.s8 %v575
        %v577 = vlaneseq
        %v578 = vshrl.u32 %v577, 7
        %v579 = vsub.s32 %v576, %v578
        %v580 = vrot.slane %v572, %v579
        %v582 = vunpack.c.l.s4 1983009808
        %v583 = vunpack.c.0.s8 %v582
        %v584 = vlaneseq
        %v585 = vshrl.u32 %v584, 7
        %v586 = vsub.s32 %v583, %v585
        %v587 = vrot.slane %v573, %v586
        %v588 = vcombine.low %v564, %v580
        %v589 = vcombine.high %v564, %v580
        %v591 = vunpack.c.l.s4 1934713408
        %v592 = vunpack.c.0.s8 %v591
        %v593 = vlaneseq
        %v594 = vshrl.u32 %v593, 7
        %v595 = vsub.s32 %v592, %v594
        %v596 = vrot.slane %v588, %v595
        %v598 = vunpack.c.l.s4 1934713408
        %v599 = vunpack.c.0.s8 %v598
        %v600 = vlaneseq
        %v601 = vshrl.u32 %v600, 7
        %v602 = vsub.s32 %v599, %v601
        %v603 = vrot.slane %v589, %v602
        %v604 = vcombine.low %v571, %v587
        %v605 = vcombine.high %v571, %v587
        %v607 = vunpack.c.l.s4 1934713408
        %v608 = vunpack.c.0.s8 %v607
        %v609 = vlaneseq
        %v610 = vshrl.u32 %v609, 7
        %v611 = vsub.s32 %v608, %v610
        %v612 = vrot.slane %v604, %v611
        %v614 = vunpack.c.l.s4 1934713408
        %v615 = vunpack.c.0.s8 %v614
        %v616 = vlaneseq
        %v617 = vshrl.u32 %v616, 7
        %v618 = vsub.s32 %v615, %v617
        %v619 = vrot.slane %v605, %v618
        %v620 = vcombine.high %v596, 0.0
        %v621 = vcombine.high %v603, 0.0
        %v622 = vcombine.high %v612, 0.0
        %v623 = vcombine.high %v619, 0.0
        %v624 = vcombine.low %v535, %v543
        %v625 = vcombine.high %v535, %v543
        %v627 = vunpack.c.l.s4 1983009808
        %v628 = vunpack.c.0.s8 %v627
        %v629 = vlaneseq
        %v630 = vshrl.u32 %v629, 7
        %v631 = vsub.s32 %v628, %v630
        %v632 = vrot.slane %v624, %v631
        %v634 = vunpack.c.l.s4 1983009808
        %v635 = vunpack.c.0.s8 %v634
        %v636 = vlaneseq
        %v637 = vshrl.u32 %v636, 7
        %v638 = vsub.s32 %v635, %v637
        %v639 = vrot.slane %v625, %v638
        %v640 = vcombine.low %v539, %v547
        %v641 = vcombine.high %v539, %v547
        %v643 = vunpack.c.l.s4 1983009808
        %v644 = vunpack.c.0.s8 %v643
        %v645 = vlaneseq
        %v646 = vshrl.u32 %v645, 7
        %v647 = vsub.s32 %v644, %v646
        %v648 = vrot.slane %v640, %v647
        %v650 = vunpack.c.l.s4 1983009808
        %v651 = vunpack.c.0.s8 %v650
        %v652 = vlaneseq
        %v653 = vshrl.u32 %v652, 7
        %v654 = vsub.s32 %v651, %v653
        %v655 = vrot.slane %v641, %v654
        %v656 = vcombine.low %v632, %v648
        %v657 = vcombine.high %v632, %v648
        %v659 = vunpack.c.l.s4 1934713408
        %v660 = vunpack.c.0.s8 %v659
        %v661 = vlaneseq
        %v662 = vshrl.u32 %v661, 7
        %v663 = vsub.s32 %v660, %v662
        %v664 = vrot.slane %v656, %v663
        %v666 = vunpack.c.l.s4 1934713408
        %v667 = vunpack.c.0.s8 %v666
        %v668 = vlaneseq
        %v669 = vshrl.u32 %v668, 7
        %v670 = vsub.s32 %v667, %v669
        %v671 = vrot.slane %v657, %v670
        %v672 = vcombine.low %v639, %v655
        %v673 = vcombine.high %v639, %v655
        %v675 = vunpack.c.l.s4 1934713408
        %v676 = vunpack.c.0.s8 %v675
        %v677 = vlaneseq
        %v678 = vshrl.u32 %v677, 7
        %v679 = vsub.s32 %v676, %v678
        %v680 = vrot.slane %v672, %v679
        %v682 = vunpack.c.l.s4 1934713408
        %v683 = vunpack.c.0.s8 %v682
        %v684 = vlaneseq
        %v685 = vshrl.u32 %v684, 7
        %v686 = vsub.s32 %v683, %v685
        %v687 = vrot.slane %v673, %v686
        %v688 = vcombine.high %v664, 0.0
        %v689 = vcombine.high %v671, 0.0
        %v690 = vcombine.high %v680, 0.0
        %v691 = vcombine.high %v687, 0.0
        %693 = vrot.lane.b32.xlu0 %v620, 16
        %v694 = vpop.permute.xlu0 %693
        %697 = vrot.lane.b32.xlu0 %v603, 32
        %v698 = vpop.permute.xlu0 %697
        %701 = vrot.lane.b32.xlu0 %v621, 48
        %v702 = vpop.permute.xlu0 %701
        %705 = vrot.lane.b32.xlu0 %v612, 64
        %v706 = vpop.permute.xlu0 %705
        %709 = vrot.lane.b32.xlu0 %v622, 80
        %v710 = vpop.permute.xlu0 %709
        %713 = vrot.lane.b32.xlu0 %v619, 96
        %v714 = vpop.permute.xlu0 %713
        %717 = vrot.lane.b32.xlu0 %v623, 112
        %v718 = vpop.permute.xlu0 %717
        %721 = vrot.lane.b32.xlu0 %v688, 16
        %v722 = vpop.permute.xlu0 %721
        %725 = vrot.lane.b32.xlu0 %v671, 32
        %v726 = vpop.permute.xlu0 %725
        %729 = vrot.lane.b32.xlu0 %v689, 48
        %v730 = vpop.permute.xlu0 %729
        %733 = vrot.lane.b32.xlu0 %v680, 64
        %v734 = vpop.permute.xlu0 %733
        %737 = vrot.lane.b32.xlu0 %v690, 80
        %v738 = vpop.permute.xlu0 %737
        %741 = vrot.lane.b32.xlu0 %v687, 96
        %v742 = vpop.permute.xlu0 %741
        %745 = vrot.lane.b32.xlu0 %v691, 112
        %v746 = vpop.permute.xlu0 %745
        %v748 = vsel %vm502, %v596, %v694
        %v749 = vsel %vm504, %v748, %v698
        %v750 = vsel %vm506, %v749, %v702
        %v751 = vsel %vm508, %v750, %v706
        %v752 = vsel %vm510, %v751, %v710
        %v753 = vsel %vm512, %v752, %v714
        %v754 = vsel %vm514, %v753, %v718
        %v755 = vsel %vm502, %v664, %v722
        %v756 = vsel %vm504, %v755, %v726
        %v757 = vsel %vm506, %v756, %v730
        %v758 = vsel %vm508, %v757, %v734
        %v759 = vsel %vm510, %v758, %v738
        %v760 = vsel %vm512, %v759, %v742
        %v761 = vsel %vm514, %v760, %v746
        %s762 = scalar_lea.vmem %s1, 4
        %v763 = vld [vmem:[%s762] sm:$0xf]
        %vm764 = vcmask 31744
        %v766 = vsel %vm764, %v763, 0
        %vm768 = vcmask 1043456
        %v770 = vsel %vm768, %v754, 0
        %v773 = vsel %vm768, %v761, 0
        %775 = vmatprep.subr.mxu0 %v773
        %776 = vmatpush1.msra.mxu0 %v770
        %777 = vmatprep.subr.mxu0 0.0
        %778 = vmatpush1.msra.mxu0 0.0
        %779 = vmatprep.subr.mxu0 0.0
        %780 = vmatpush1.msra.mxu0 0.0
        %781 = vmatprep.subr.mxu0 0.0
        %782 = vmatpush1.msra.mxu0 0.0
        %783 = vmatprep.subr.mxu0 0.0
        %784 = vmatpush1.msra.mxu0 0.0
        %785 = vmatprep.subr.mxu0 0.0
        %786 = vmatpush1.msra.mxu0 0.0
        %787 = vmatprep.subr.mxu0 0.0
        %788 = vmatpush1.msra.mxu0 0.0
        %789 = vmatprep.subr.mxu0 0.0
        %790 = vmatpush1.msra.mxu0 0.0
        %791 = vmatprep.subr.mxu0 0.0
        %792 = vmatpush1.msra.mxu0 0.0
        %793 = vmatprep.subr.mxu0 0.0
        %794 = vmatpush1.msra.mxu0 0.0
        %795 = vmatprep.subr.mxu0 0.0
        %796 = vmatpush1.msra.mxu0 0.0
        %797 = vmatprep.subr.mxu0 0.0
        %798 = vmatpush1.msra.mxu0 0.0
        %799 = vmatprep.subr.mxu0 0.0
        %800 = vmatpush1.msra.mxu0 0.0
        %801 = vmatprep.subr.mxu0 0.0
        %802 = vmatpush1.msra.mxu0 0.0
        %803 = vmatprep.subr.mxu0 0.0
        %804 = vmatpush1.msra.mxu0 0.0
        %805 = vmatprep.subr.mxu0 0.0
        %806 = vmatpush1.msra.mxu0 0.0
        %807 = vmatprep.subr.mxu0 0.0
        %808 = vmatpush1.msra.mxu0 0.0
        %809 = vmatprep.subr.mxu0 0.0
        %810 = vmatpush1.msra.mxu0 0.0
        %811 = vmatprep.subr.mxu0 0.0
        %812 = vmatpush1.msra.mxu0 0.0
        %813 = vmatprep.subr.mxu0 0.0
        %814 = vmatpush1.msra.mxu0 0.0
        %815 = vmatprep.subr.mxu0 0.0
        %816 = vmatpush1.msra.mxu0 0.0
        %817 = vmatprep.subr.mxu0 0.0
        %818 = vmatpush1.msra.mxu0 0.0
        %819 = vmatprep.subr.mxu0 0.0
        %820 = vmatpush1.msra.mxu0 0.0
        %821 = vmatprep.subr.mxu0 0.0
        %822 = vmatpush1.msra.mxu0 0.0
        %823 = vmatprep.subr.mxu0 0.0
        %824 = vmatpush1.msra.mxu0 0.0
        %825 = vmatprep.subr.mxu0 0.0
        %826 = vmatpush1.msra.mxu0 0.0
        %827 = vmatprep.subr.mxu0 0.0
        %828 = vmatpush1.msra.mxu0 0.0
        %829 = vmatprep.subr.mxu0 0.0
        %830 = vmatpush1.msra.mxu0 0.0
        %831 = vmatprep.subr.mxu0 0.0
        %832 = vmatpush1.msra.mxu0 0.0
        %833 = vmatprep.subr.mxu0 0.0
        %834 = vmatpush1.msra.mxu0 0.0
        %835 = vmatprep.subr.mxu0 0.0
        %836 = vmatpush1.msra.mxu0 0.0
        %837 = vmatprep.subr.mxu0 0.0
        %838 = vmatpush1.msra.mxu0 0.0
        %839 = vmatprep.mubr.f32.mxu0 0.0
        %840 = vmatmul.mubr.f32.gmra.mrb[0].mxu0 %v766
        %v841 = vpop.f32.mrb[0].mxu0
        %v842 = vadd.f32 0.0, %v841
        %v843 = vpop.f32.mrb[0].mxu0
        %v844 = vadd.f32 0.0, %v843
        %845 = vdwg.mxu0
        %v847 = vsel %vm764, %v523, 0
        %v850 = vsel %vm768, %v515, 0
        %v853 = vsel %vm768, %v522, 0
        %855 = vmatprep.subr.mxu0 %v853
        %856 = vmatpush1.msra.mxu0 %v850
        %857 = vmatprep.subr.mxu0 0.0
        %858 = vmatpush1.msra.mxu0 0.0
        %859 = vmatprep.subr.mxu0 0.0
        %860 = vmatpush1.msra.mxu0 0.0
        %861 = vmatprep.subr.mxu0 0.0
        %862 = vmatpush1.msra.mxu0 0.0
        %863 = vmatprep.subr.mxu0 0.0
        %864 = vmatpush1.msra.mxu0 0.0
        %865 = vmatprep.subr.mxu0 0.0
        %866 = vmatpush1.msra.mxu0 0.0
        %867 = vmatprep.subr.mxu0 0.0
        %868 = vmatpush1.msra.mxu0 0.0
        %869 = vmatprep.subr.mxu0 0.0
        %870 = vmatpush1.msra.mxu0 0.0
        %871 = vmatprep.subr.mxu0 0.0
        %872 = vmatpush1.msra.mxu0 0.0
        %873 = vmatprep.subr.mxu0 0.0
        %874 = vmatpush1.msra.mxu0 0.0
        %875 = vmatprep.subr.mxu0 0.0
        %876 = vmatpush1.msra.mxu0 0.0
        %877 = vmatprep.subr.mxu0 0.0
        %878 = vmatpush1.msra.mxu0 0.0
        %879 = vmatprep.subr.mxu0 0.0
        %880 = vmatpush1.msra.mxu0 0.0
        %881 = vmatprep.subr.mxu0 0.0
        %882 = vmatpush1.msra.mxu0 0.0
        %883 = vmatprep.subr.mxu0 0.0
        %884 = vmatpush1.msra.mxu0 0.0
        %885 = vmatprep.subr.mxu0 0.0
        %886 = vmatpush1.msra.mxu0 0.0
        %887 = vmatprep.subr.mxu0 0.0
        %888 = vmatpush1.msra.mxu0 0.0
        %889 = vmatprep.subr.mxu0 0.0
        %890 = vmatpush1.msra.mxu0 0.0
        %891 = vmatprep.subr.mxu0 0.0
        %892 = vmatpush1.msra.mxu0 0.0
        %893 = vmatprep.subr.mxu0 0.0
        %894 = vmatpush1.msra.mxu0 0.0
        %895 = vmatprep.subr.mxu0 0.0
        %896 = vmatpush1.msra.mxu0 0.0
        %897 = vmatprep.subr.mxu0 0.0
        %898 = vmatpush1.msra.mxu0 0.0
        %899 = vmatprep.subr.mxu0 0.0
        %900 = vmatpush1.msra.mxu0 0.0
        %901 = vmatprep.subr.mxu0 0.0
        %902 = vmatpush1.msra.mxu0 0.0
        %903 = vmatprep.subr.mxu0 0.0
        %904 = vmatpush1.msra.mxu0 0.0
        %905 = vmatprep.subr.mxu0 0.0
        %906 = vmatpush1.msra.mxu0 0.0
        %907 = vmatprep.subr.mxu0 0.0
        %908 = vmatpush1.msra.mxu0 0.0
        %909 = vmatprep.subr.mxu0 0.0
        %910 = vmatpush1.msra.mxu0 0.0
        %911 = vmatprep.subr.mxu0 0.0
        %912 = vmatpush1.msra.mxu0 0.0
        %913 = vmatprep.subr.mxu0 0.0
        %914 = vmatpush1.msra.mxu0 0.0
        %915 = vmatprep.subr.mxu0 0.0
        %916 = vmatpush1.msra.mxu0 0.0
        %917 = vmatprep.subr.mxu0 0.0
        %918 = vmatpush1.msra.mxu0 0.0
        %919 = vmatprep.mubr.f32.mxu0 0.0
        %920 = vmatmul.mubr.f32.gmra.mrb[0].mxu0 %v847
        %v921 = vpop.f32.mrb[0].mxu0
        %v922 = vadd.f32 %v842, %v921
        %v923 = vpop.f32.mrb[0].mxu0
        %v924 = vadd.f32 %v844, %v923
        %925 = vdwg.mxu0
        %v926 = vld [vmem:[#allocation2] sm:$0xff]
        %v927 = vld [vmem:[#allocation2 + $0x8] sm:$0xff]
        %v928 = vld [vmem:[#allocation2 + $0x18] sm:$0xff]
        %v929 = vld [vmem:[#allocation2 + $0x20] sm:$0xff]
        %v930 = vld [vmem:[#allocation2 + $0x30] sm:$0xff]
        %v931 = vld [vmem:[#allocation2 + $0x38] sm:$0xff]
        %v932 = vld [vmem:[#allocation2 + $0x48] sm:$0xff]
        %v933 = vld [vmem:[#allocation2 + $0x50] sm:$0xff]
        %942 = vrot.lane.b32.xlu0 %v926, 126
        %v943 = vpop.permute.xlu0 %942
        %944 = vrot.lane.b32.xlu0 %v927, 126
        %v945 = vpop.permute.xlu0 %944
        %946 = vrot.lane.b32.xlu0 %v928, 126
        %v947 = vpop.permute.xlu0 %946
        %948 = vrot.lane.b32.xlu0 %v929, 126
        %v949 = vpop.permute.xlu0 %948
        %950 = vrot.lane.b32.xlu0 %v930, 126
        %v951 = vpop.permute.xlu0 %950
        %952 = vrot.lane.b32.xlu0 %v931, 126
        %v953 = vpop.permute.xlu0 %952
        %954 = vrot.lane.b32.xlu0 %v932, 126
        %v955 = vpop.permute.xlu0 %954
        %956 = vrot.lane.b32.xlu0 %v933, 126
        %v957 = vpop.permute.xlu0 %956
        %v966 = vcombine.low %v943, %v951
        %v967 = vcombine.high %v943, %v951
        %v969 = vunpack.c.l.s4 1983009808
        %v970 = vunpack.c.0.s8 %v969
        %v971 = vlaneseq
        %v972 = vshrl.u32 %v971, 7
        %v973 = vsub.s32 %v970, %v972
        %v974 = vrot.slane %v966, %v973
        %v976 = vunpack.c.l.s4 1983009808
        %v977 = vunpack.c.0.s8 %v976
        %v978 = vlaneseq
        %v979 = vshrl.u32 %v978, 7
        %v980 = vsub.s32 %v977, %v979
        %v981 = vrot.slane %v967, %v980
        %v982 = vcombine.low %v947, %v955
        %v983 = vcombine.high %v947, %v955
        %v985 = vunpack.c.l.s4 1983009808
        %v986 = vunpack.c.0.s8 %v985
        %v987 = vlaneseq
        %v988 = vshrl.u32 %v987, 7
        %v989 = vsub.s32 %v986, %v988
        %v990 = vrot.slane %v982, %v989
        %v992 = vunpack.c.l.s4 1983009808
        %v993 = vunpack.c.0.s8 %v992
        %v994 = vlaneseq
        %v995 = vshrl.u32 %v994, 7
        %v996 = vsub.s32 %v993, %v995
        %v997 = vrot.slane %v983, %v996
        %v998 = vcombine.low %v974, %v990
        %v999 = vcombine.high %v974, %v990
        %v1001 = vunpack.c.l.s4 1934713408
        %v1002 = vunpack.c.0.s8 %v1001
        %v1003 = vlaneseq
        %v1004 = vshrl.u32 %v1003, 7
        %v1005 = vsub.s32 %v1002, %v1004
        %v1006 = vrot.slane %v998, %v1005
        %v1008 = vunpack.c.l.s4 1934713408
        %v1009 = vunpack.c.0.s8 %v1008
        %v1010 = vlaneseq
        %v1011 = vshrl.u32 %v1010, 7
        %v1012 = vsub.s32 %v1009, %v1011
        %v1013 = vrot.slane %v999, %v1012
        %v1014 = vcombine.low %v981, %v997
        %v1015 = vcombine.high %v981, %v997
        %v1017 = vunpack.c.l.s4 1934713408
        %v1018 = vunpack.c.0.s8 %v1017
        %v1019 = vlaneseq
        %v1020 = vshrl.u32 %v1019, 7
        %v1021 = vsub.s32 %v1018, %v1020
        %v1022 = vrot.slane %v1014, %v1021
        %v1024 = vunpack.c.l.s4 1934713408
        %v1025 = vunpack.c.0.s8 %v1024
        %v1026 = vlaneseq
        %v1027 = vshrl.u32 %v1026, 7
        %v1028 = vsub.s32 %v1025, %v1027
        %v1029 = vrot.slane %v1015, %v1028
        %v1030 = vcombine.high %v1006, 0.0
        %v1031 = vcombine.high %v1013, 0.0
        %v1032 = vcombine.high %v1022, 0.0
        %v1033 = vcombine.high %v1029, 0.0
        %v1034 = vcombine.low %v945, %v953
        %v1035 = vcombine.high %v945, %v953
        %v1037 = vunpack.c.l.s4 1983009808
        %v1038 = vunpack.c.0.s8 %v1037
        %v1039 = vlaneseq
        %v1040 = vshrl.u32 %v1039, 7
        %v1041 = vsub.s32 %v1038, %v1040
        %v1042 = vrot.slane %v1034, %v1041
        %v1044 = vunpack.c.l.s4 1983009808
        %v1045 = vunpack.c.0.s8 %v1044
        %v1046 = vlaneseq
        %v1047 = vshrl.u32 %v1046, 7
        %v1048 = vsub.s32 %v1045, %v1047
        %v1049 = vrot.slane %v1035, %v1048
        %v1050 = vcombine.low %v949, %v957
        %v1051 = vcombine.high %v949, %v957
        %v1053 = vunpack.c.l.s4 1983009808
        %v1054 = vunpack.c.0.s8 %v1053
        %v1055 = vlaneseq
        %v1056 = vshrl.u32 %v1055, 7
        %v1057 = vsub.s32 %v1054, %v1056
        %v1058 = vrot.slane %v1050, %v1057
        %v1060 = vunpack.c.l.s4 1983009808
        %v1061 = vunpack.c.0.s8 %v1060
        %v1062 = vlaneseq
        %v1063 = vshrl.u32 %v1062, 7
        %v1064 = vsub.s32 %v1061, %v1063
        %v1065 = vrot.slane %v1051, %v1064
        %v1066 = vcombine.low %v1042, %v1058
        %v1067 = vcombine.high %v1042, %v1058
        %v1069 = vunpack.c.l.s4 1934713408
        %v1070 = vunpack.c.0.s8 %v1069
        %v1071 = vlaneseq
        %v1072 = vshrl.u32 %v1071, 7
        %v1073 = vsub.s32 %v1070, %v1072
        %v1074 = vrot.slane %v1066, %v1073
        %v1076 = vunpack.c.l.s4 1934713408
        %v1077 = vunpack.c.0.s8 %v1076
        %v1078 = vlaneseq
        %v1079 = vshrl.u32 %v1078, 7
        %v1080 = vsub.s32 %v1077, %v1079
        %v1081 = vrot.slane %v1067, %v1080
        %v1082 = vcombine.low %v1049, %v1065
        %v1083 = vcombine.high %v1049, %v1065
        %v1085 = vunpack.c.l.s4 1934713408
        %v1086 = vunpack.c.0.s8 %v1085
        %v1087 = vlaneseq
        %v1088 = vshrl.u32 %v1087, 7
        %v1089 = vsub.s32 %v1086, %v1088
        %v1090 = vrot.slane %v1082, %v1089
        %v1092 = vunpack.c.l.s4 1934713408
        %v1093 = vunpack.c.0.s8 %v1092
        %v1094 = vlaneseq
        %v1095 = vshrl.u32 %v1094, 7
        %v1096 = vsub.s32 %v1093, %v1095
        %v1097 = vrot.slane %v1083, %v1096
        %v1098 = vcombine.high %v1074, 0.0
        %v1099 = vcombine.high %v1081, 0.0
        %v1100 = vcombine.high %v1090, 0.0
        %v1101 = vcombine.high %v1097, 0.0
        %1103 = vrot.lane.b32.xlu0 %v1030, 16
        %v1104 = vpop.permute.xlu0 %1103
        %1107 = vrot.lane.b32.xlu0 %v1013, 32
        %v1108 = vpop.permute.xlu0 %1107
        %1111 = vrot.lane.b32.xlu0 %v1031, 48
        %v1112 = vpop.permute.xlu0 %1111
        %1115 = vrot.lane.b32.xlu0 %v1022, 64
        %v1116 = vpop.permute.xlu0 %1115
        %1119 = vrot.lane.b32.xlu0 %v1032, 80
        %v1120 = vpop.permute.xlu0 %1119
        %1123 = vrot.lane.b32.xlu0 %v1029, 96
        %v1124 = vpop.permute.xlu0 %1123
        %1127 = vrot.lane.b32.xlu0 %v1033, 112
        %v1128 = vpop.permute.xlu0 %1127
        %1131 = vrot.lane.b32.xlu0 %v1098, 16
        %v1132 = vpop.permute.xlu0 %1131
        %1135 = vrot.lane.b32.xlu0 %v1081, 32
        %v1136 = vpop.permute.xlu0 %1135
        %1139 = vrot.lane.b32.xlu0 %v1099, 48
        %v1140 = vpop.permute.xlu0 %1139
        %1143 = vrot.lane.b32.xlu0 %v1090, 64
        %v1144 = vpop.permute.xlu0 %1143
        %1147 = vrot.lane.b32.xlu0 %v1100, 80
        %v1148 = vpop.permute.xlu0 %1147
        %1151 = vrot.lane.b32.xlu0 %v1097, 96
        %v1152 = vpop.permute.xlu0 %1151
        %1155 = vrot.lane.b32.xlu0 %v1101, 112
        %v1156 = vpop.permute.xlu0 %1155
        %v1158 = vsel %vm502, %v1006, %v1104
        %v1159 = vsel %vm504, %v1158, %v1108
        %v1160 = vsel %vm506, %v1159, %v1112
        %v1161 = vsel %vm508, %v1160, %v1116
        %v1162 = vsel %vm510, %v1161, %v1120
        %v1163 = vsel %vm512, %v1162, %v1124
        %v1164 = vsel %vm514, %v1163, %v1128
        %v1165 = vsel %vm502, %v1074, %v1132
        %v1166 = vsel %vm504, %v1165, %v1136
        %v1167 = vsel %vm506, %v1166, %v1140
        %v1168 = vsel %vm508, %v1167, %v1144
        %v1169 = vsel %vm510, %v1168, %v1148
        %v1170 = vsel %vm512, %v1169, %v1152
        %v1171 = vsel %vm514, %v1170, %v1156
        %s1172 = scalar_lea.vmem %s1, 8
        %v1173 = vld [vmem:[%s1172] sm:$0xf]
        %v1175 = vsel %vm764, %v1173, 0
        %v1178 = vsel %vm768, %v1164, 0
        %v1181 = vsel %vm768, %v1171, 0
        %1183 = vmatprep.subr.mxu0 %v1181
        %1184 = vmatpush1.msra.mxu0 %v1178
        %1185 = vmatprep.subr.mxu0 0.0
        %1186 = vmatpush1.msra.mxu0 0.0
        %1187 = vmatprep.subr.mxu0 0.0
        %1188 = vmatpush1.msra.mxu0 0.0
        %1189 = vmatprep.subr.mxu0 0.0
        %1190 = vmatpush1.msra.mxu0 0.0
        %1191 = vmatprep.subr.mxu0 0.0
        %1192 = vmatpush1.msra.mxu0 0.0
        %1193 = vmatprep.subr.mxu0 0.0
        %1194 = vmatpush1.msra.mxu0 0.0
        %1195 = vmatprep.subr.mxu0 0.0
        %1196 = vmatpush1.msra.mxu0 0.0
        %1197 = vmatprep.subr.mxu0 0.0
        %1198 = vmatpush1.msra.mxu0 0.0
        %1199 = vmatprep.subr.mxu0 0.0
        %1200 = vmatpush1.msra.mxu0 0.0
        %1201 = vmatprep.subr.mxu0 0.0
        %1202 = vmatpush1.msra.mxu0 0.0
        %1203 = vmatprep.subr.mxu0 0.0
        %1204 = vmatpush1.msra.mxu0 0.0
        %1205 = vmatprep.subr.mxu0 0.0
        %1206 = vmatpush1.msra.mxu0 0.0
        %1207 = vmatprep.subr.mxu0 0.0
        %1208 = vmatpush1.msra.mxu0 0.0
        %1209 = vmatprep.subr.mxu0 0.0
        %1210 = vmatpush1.msra.mxu0 0.0
        %1211 = vmatprep.subr.mxu0 0.0
        %1212 = vmatpush1.msra.mxu0 0.0
        %1213 = vmatprep.subr.mxu0 0.0
        %1214 = vmatpush1.msra.mxu0 0.0
        %1215 = vmatprep.subr.mxu0 0.0
        %1216 = vmatpush1.msra.mxu0 0.0
        %1217 = vmatprep.subr.mxu0 0.0
        %1218 = vmatpush1.msra.mxu0 0.0
        %1219 = vmatprep.subr.mxu0 0.0
        %1220 = vmatpush1.msra.mxu0 0.0
        %1221 = vmatprep.subr.mxu0 0.0
        %1222 = vmatpush1.msra.mxu0 0.0
        %1223 = vmatprep.subr.mxu0 0.0
        %1224 = vmatpush1.msra.mxu0 0.0
        %1225 = vmatprep.subr.mxu0 0.0
        %1226 = vmatpush1.msra.mxu0 0.0
        %1227 = vmatprep.subr.mxu0 0.0
        %1228 = vmatpush1.msra.mxu0 0.0
        %1229 = vmatprep.subr.mxu0 0.0
        %1230 = vmatpush1.msra.mxu0 0.0
        %1231 = vmatprep.subr.mxu0 0.0
        %1232 = vmatpush1.msra.mxu0 0.0
        %1233 = vmatprep.subr.mxu0 0.0
        %1234 = vmatpush1.msra.mxu0 0.0
        %1235 = vmatprep.subr.mxu0 0.0
        %1236 = vmatpush1.msra.mxu0 0.0
        %1237 = vmatprep.subr.mxu0 0.0
        %1238 = vmatpush1.msra.mxu0 0.0
        %1239 = vmatprep.subr.mxu0 0.0
        %1240 = vmatpush1.msra.mxu0 0.0
        %1241 = vmatprep.subr.mxu0 0.0
        %1242 = vmatpush1.msra.mxu0 0.0
        %1243 = vmatprep.subr.mxu0 0.0
        %1244 = vmatpush1.msra.mxu0 0.0
        %1245 = vmatprep.subr.mxu0 0.0
        %1246 = vmatpush1.msra.mxu0 0.0
        %1247 = vmatprep.mubr.f32.mxu0 0.0
        %1248 = vmatmul.mubr.f32.gmra.mrb[0].mxu0 %v1175
        %v1249 = vpop.f32.mrb[0].mxu0
        %v1250 = vadd.f32 0.0, %v1249
        %v1251 = vpop.f32.mrb[0].mxu0
        %v1252 = vadd.f32 0.0, %v1251
        %1253 = vdwg.mxu0
        %v1254 = vadd.f32 %v922, %v1250
        %v1255 = vadd.f32 %v924, %v1252
        %v1256 = vld [vmem:[#allocation2 + $0x1] sm:$0xff]
        %v1257 = vld [vmem:[#allocation2 + $0x9] sm:$0xff]
        %v1258 = vld [vmem:[#allocation2 + $0x19] sm:$0xff]
        %v1259 = vld [vmem:[#allocation2 + $0x21] sm:$0xff]
        %v1260 = vld [vmem:[#allocation2 + $0x31] sm:$0xff]
        %v1261 = vld [vmem:[#allocation2 + $0x39] sm:$0xff]
        %v1262 = vld [vmem:[#allocation2 + $0x49] sm:$0xff]
        %v1263 = vld [vmem:[#allocation2 + $0x51] sm:$0xff]
        %v1264 = vcombine.low %v1256, %v1260
        %v1265 = vcombine.high %v1256, %v1260
        %v1267 = vunpack.c.l.s4 1983009808
        %v1268 = vunpack.c.0.s8 %v1267
        %v1269 = vlaneseq
        %v1270 = vshrl.u32 %v1269, 7
        %v1271 = vsub.s32 %v1268, %v1270
        %v1272 = vrot.slane %v1264, %v1271
        %v1274 = vunpack.c.l.s4 1983009808
        %v1275 = vunpack.c.0.s8 %v1274
        %v1276 = vlaneseq
        %v1277 = vshrl.u32 %v1276, 7
        %v1278 = vsub.s32 %v1275, %v1277
        %v1279 = vrot.slane %v1265, %v1278
        %v1280 = vcombine.low %v1258, %v1262
        %v1281 = vcombine.high %v1258, %v1262
        %v1283 = vunpack.c.l.s4 1983009808
        %v1284 = vunpack.c.0.s8 %v1283
        %v1285 = vlaneseq
        %v1286 = vshrl.u32 %v1285, 7
        %v1287 = vsub.s32 %v1284, %v1286
        %v1288 = vrot.slane %v1280, %v1287
        %v1290 = vunpack.c.l.s4 1983009808
        %v1291 = vunpack.c.0.s8 %v1290
        %v1292 = vlaneseq
        %v1293 = vshrl.u32 %v1292, 7
        %v1294 = vsub.s32 %v1291, %v1293
        %v1295 = vrot.slane %v1281, %v1294
        %v1296 = vcombine.low %v1272, %v1288
        %v1297 = vcombine.high %v1272, %v1288
        %v1299 = vunpack.c.l.s4 1934713408
        %v1300 = vunpack.c.0.s8 %v1299
        %v1301 = vlaneseq
        %v1302 = vshrl.u32 %v1301, 7
        %v1303 = vsub.s32 %v1300, %v1302
        %v1304 = vrot.slane %v1296, %v1303
        %v1306 = vunpack.c.l.s4 1934713408
        %v1307 = vunpack.c.0.s8 %v1306
        %v1308 = vlaneseq
        %v1309 = vshrl.u32 %v1308, 7
        %v1310 = vsub.s32 %v1307, %v1309
        %v1311 = vrot.slane %v1297, %v1310
        %v1312 = vcombine.low %v1279, %v1295
        %v1313 = vcombine.high %v1279, %v1295
        %v1315 = vunpack.c.l.s4 1934713408
        %v1316 = vunpack.c.0.s8 %v1315
        %v1317 = vlaneseq
        %v1318 = vshrl.u32 %v1317, 7
        %v1319 = vsub.s32 %v1316, %v1318
        %v1320 = vrot.slane %v1312, %v1319
        %v1322 = vunpack.c.l.s4 1934713408
        %v1323 = vunpack.c.0.s8 %v1322
        %v1324 = vlaneseq
        %v1325 = vshrl.u32 %v1324, 7
        %v1326 = vsub.s32 %v1323, %v1325
        %v1327 = vrot.slane %v1313, %v1326
        %v1328 = vcombine.high %v1304, 0.0
        %v1329 = vcombine.high %v1311, 0.0
        %v1330 = vcombine.high %v1320, 0.0
        %v1331 = vcombine.high %v1327, 0.0
        %v1332 = vcombine.low %v1257, %v1261
        %v1333 = vcombine.high %v1257, %v1261
        %v1335 = vunpack.c.l.s4 1983009808
        %v1336 = vunpack.c.0.s8 %v1335
        %v1337 = vlaneseq
        %v1338 = vshrl.u32 %v1337, 7
        %v1339 = vsub.s32 %v1336, %v1338
        %v1340 = vrot.slane %v1332, %v1339
        %v1342 = vunpack.c.l.s4 1983009808
        %v1343 = vunpack.c.0.s8 %v1342
        %v1344 = vlaneseq
        %v1345 = vshrl.u32 %v1344, 7
        %v1346 = vsub.s32 %v1343, %v1345
        %v1347 = vrot.slane %v1333, %v1346
        %v1348 = vcombine.low %v1259, %v1263
        %v1349 = vcombine.high %v1259, %v1263
        %v1351 = vunpack.c.l.s4 1983009808
        %v1352 = vunpack.c.0.s8 %v1351
        %v1353 = vlaneseq
        %v1354 = vshrl.u32 %v1353, 7
        %v1355 = vsub.s32 %v1352, %v1354
        %v1356 = vrot.slane %v1348, %v1355
        %v1358 = vunpack.c.l.s4 1983009808
        %v1359 = vunpack.c.0.s8 %v1358
        %v1360 = vlaneseq
        %v1361 = vshrl.u32 %v1360, 7
        %v1362 = vsub.s32 %v1359, %v1361
        %v1363 = vrot.slane %v1349, %v1362
        %v1364 = vcombine.low %v1340, %v1356
        %v1365 = vcombine.high %v1340, %v1356
        %v1367 = vunpack.c.l.s4 1934713408
        %v1368 = vunpack.c.0.s8 %v1367
        %v1369 = vlaneseq
        %v1370 = vshrl.u32 %v1369, 7
        %v1371 = vsub.s32 %v1368, %v1370
        %v1372 = vrot.slane %v1364, %v1371
        %v1374 = vunpack.c.l.s4 1934713408
        %v1375 = vunpack.c.0.s8 %v1374
        %v1376 = vlaneseq
        %v1377 = vshrl.u32 %v1376, 7
        %v1378 = vsub.s32 %v1375, %v1377
        %v1379 = vrot.slane %v1365, %v1378
        %v1380 = vcombine.low %v1347, %v1363
        %v1381 = vcombine.high %v1347, %v1363
        %v1383 = vunpack.c.l.s4 1934713408
        %v1384 = vunpack.c.0.s8 %v1383
        %v1385 = vlaneseq
        %v1386 = vshrl.u32 %v1385, 7
        %v1387 = vsub.s32 %v1384, %v1386
        %v1388 = vrot.slane %v1380, %v1387
        %v1390 = vunpack.c.l.s4 1934713408
        %v1391 = vunpack.c.0.s8 %v1390
        %v1392 = vlaneseq
        %v1393 = vshrl.u32 %v1392, 7
        %v1394 = vsub.s32 %v1391, %v1393
        %v1395 = vrot.slane %v1381, %v1394
        %v1396 = vcombine.high %v1372, 0.0
        %v1397 = vcombine.high %v1379, 0.0
        %v1398 = vcombine.high %v1388, 0.0
        %v1399 = vcombine.high %v1395, 0.0
        %1401 = vrot.lane.b32.xlu0 %v1328, 16
        %v1402 = vpop.permute.xlu0 %1401
        %1405 = vrot.lane.b32.xlu0 %v1311, 32
        %v1406 = vpop.permute.xlu0 %1405
        %1409 = vrot.lane.b32.xlu0 %v1329, 48
        %v1410 = vpop.permute.xlu0 %1409
        %1413 = vrot.lane.b32.xlu0 %v1320, 64
        %v1414 = vpop.permute.xlu0 %1413
        %1417 = vrot.lane.b32.xlu0 %v1330, 80
        %v1418 = vpop.permute.xlu0 %1417
        %1421 = vrot.lane.b32.xlu0 %v1327, 96
        %v1422 = vpop.permute.xlu0 %1421
        %1425 = vrot.lane.b32.xlu0 %v1331, 112
        %v1426 = vpop.permute.xlu0 %1425
        %1429 = vrot.lane.b32.xlu0 %v1396, 16
        %v1430 = vpop.permute.xlu0 %1429
        %1433 = vrot.lane.b32.xlu0 %v1379, 32
        %v1434 = vpop.permute.xlu0 %1433
        %1437 = vrot.lane.b32.xlu0 %v1397, 48
        %v1438 = vpop.permute.xlu0 %1437
        %1441 = vrot.lane.b32.xlu0 %v1388, 64
        %v1442 = vpop.permute.xlu0 %1441
        %1445 = vrot.lane.b32.xlu0 %v1398, 80
        %v1446 = vpop.permute.xlu0 %1445
        %1449 = vrot.lane.b32.xlu0 %v1395, 96
        %v1450 = vpop.permute.xlu0 %1449
        %1453 = vrot.lane.b32.xlu0 %v1399, 112
        %v1454 = vpop.permute.xlu0 %1453
        %v1456 = vsel %vm502, %v1304, %v1402
        %v1457 = vsel %vm504, %v1456, %v1406
        %v1458 = vsel %vm506, %v1457, %v1410
        %v1459 = vsel %vm508, %v1458, %v1414
        %v1460 = vsel %vm510, %v1459, %v1418
        %v1461 = vsel %vm512, %v1460, %v1422
        %v1462 = vsel %vm514, %v1461, %v1426
        %v1463 = vsel %vm502, %v1372, %v1430
        %v1464 = vsel %vm504, %v1463, %v1434
        %v1465 = vsel %vm506, %v1464, %v1438
        %v1466 = vsel %vm508, %v1465, %v1442
        %v1467 = vsel %vm510, %v1466, %v1446
        %v1468 = vsel %vm512, %v1467, %v1450
        %v1469 = vsel %vm514, %v1468, %v1454
        %s1470 = scalar_lea.vmem %s1, 12
        %v1471 = vld [vmem:[%s1470] sm:$0xf]
        %v1473 = vsel %vm764, %v1471, 0
        %v1476 = vsel %vm768, %v1462, 0
        %v1479 = vsel %vm768, %v1469, 0
        %1481 = vmatprep.subr.mxu0 %v1479
        %1482 = vmatpush1.msra.mxu0 %v1476
        %1483 = vmatprep.subr.mxu0 0.0
        %1484 = vmatpush1.msra.mxu0 0.0
        %1485 = vmatprep.subr.mxu0 0.0
        %1486 = vmatpush1.msra.mxu0 0.0
        %1487 = vmatprep.subr.mxu0 0.0
        %1488 = vmatpush1.msra.mxu0 0.0
        %1489 = vmatprep.subr.mxu0 0.0
        %1490 = vmatpush1.msra.mxu0 0.0
        %1491 = vmatprep.subr.mxu0 0.0
        %1492 = vmatpush1.msra.mxu0 0.0
        %1493 = vmatprep.subr.mxu0 0.0
        %1494 = vmatpush1.msra.mxu0 0.0
        %1495 = vmatprep.subr.mxu0 0.0
        %1496 = vmatpush1.msra.mxu0 0.0
        %1497 = vmatprep.subr.mxu0 0.0
        %1498 = vmatpush1.msra.mxu0 0.0
        %1499 = vmatprep.subr.mxu0 0.0
        %1500 = vmatpush1.msra.mxu0 0.0
        %1501 = vmatprep.subr.mxu0 0.0
        %1502 = vmatpush1.msra.mxu0 0.0
        %1503 = vmatprep.subr.mxu0 0.0
        %1504 = vmatpush1.msra.mxu0 0.0
        %1505 = vmatprep.subr.mxu0 0.0
        %1506 = vmatpush1.msra.mxu0 0.0
        %1507 = vmatprep.subr.mxu0 0.0
        %1508 = vmatpush1.msra.mxu0 0.0
        %1509 = vmatprep.subr.mxu0 0.0
        %1510 = vmatpush1.msra.mxu0 0.0
        %1511 = vmatprep.subr.mxu0 0.0
        %1512 = vmatpush1.msra.mxu0 0.0
        %1513 = vmatprep.subr.mxu0 0.0
        %1514 = vmatpush1.msra.mxu0 0.0
        %1515 = vmatprep.subr.mxu0 0.0
        %1516 = vmatpush1.msra.mxu0 0.0
        %1517 = vmatprep.subr.mxu0 0.0
        %1518 = vmatpush1.msra.mxu0 0.0
        %1519 = vmatprep.subr.mxu0 0.0
        %1520 = vmatpush1.msra.mxu0 0.0
        %1521 = vmatprep.subr.mxu0 0.0
        %1522 = vmatpush1.msra.mxu0 0.0
        %1523 = vmatprep.subr.mxu0 0.0
        %1524 = vmatpush1.msra.mxu0 0.0
        %1525 = vmatprep.subr.mxu0 0.0
        %1526 = vmatpush1.msra.mxu0 0.0
        %1527 = vmatprep.subr.mxu0 0.0
        %1528 = vmatpush1.msra.mxu0 0.0
        %1529 = vmatprep.subr.mxu0 0.0
        %1530 = vmatpush1.msra.mxu0 0.0
        %1531 = vmatprep.subr.mxu0 0.0
        %1532 = vmatpush1.msra.mxu0 0.0
        %1533 = vmatprep.subr.mxu0 0.0
        %1534 = vmatpush1.msra.mxu0 0.0
        %1535 = vmatprep.subr.mxu0 0.0
        %1536 = vmatpush1.msra.mxu0 0.0
        %1537 = vmatprep.subr.mxu0 0.0
        %1538 = vmatpush1.msra.mxu0 0.0
        %1539 = vmatprep.subr.mxu0 0.0
        %1540 = vmatpush1.msra.mxu0 0.0
        %1541 = vmatprep.subr.mxu0 0.0
        %1542 = vmatpush1.msra.mxu0 0.0
        %1543 = vmatprep.subr.mxu0 0.0
        %1544 = vmatpush1.msra.mxu0 0.0
        %1545 = vmatprep.mubr.f32.mxu0 0.0
        %1546 = vmatmul.mubr.f32.gmra.mrb[0].mxu0 %v1473
        %v1547 = vpop.f32.mrb[0].mxu0
        %v1548 = vadd.f32 0.0, %v1547
        %v1549 = vpop.f32.mrb[0].mxu0
        %v1550 = vadd.f32 0.0, %v1549
        %1551 = vdwg.mxu0
        %v1552 = vadd.f32 %v1254, %v1548
        %v1553 = vadd.f32 %v1255, %v1550
        %v1554 = vld [vmem:[#allocation2 + $0x1] sm:$0xff]
        %v1555 = vld [vmem:[#allocation2 + $0x9] sm:$0xff]
        %v1556 = vld [vmem:[#allocation2 + $0x19] sm:$0xff]
        %v1557 = vld [vmem:[#allocation2 + $0x21] sm:$0xff]
        %v1558 = vld [vmem:[#allocation2 + $0x31] sm:$0xff]
        %v1559 = vld [vmem:[#allocation2 + $0x39] sm:$0xff]
        %v1560 = vld [vmem:[#allocation2 + $0x49] sm:$0xff]
        %v1561 = vld [vmem:[#allocation2 + $0x51] sm:$0xff]
        %1570 = vrot.lane.b32.xlu0 %v1554, 127
        %v1571 = vpop.permute.xlu0 %1570
        %1572 = vrot.lane.b32.xlu0 %v1555, 127
        %v1573 = vpop.permute.xlu0 %1572
        %1574 = vrot.lane.b32.xlu0 %v1556, 127
        %v1575 = vpop.permute.xlu0 %1574
        %1576 = vrot.lane.b32.xlu0 %v1557, 127
        %v1577 = vpop.permute.xlu0 %1576
        %1578 = vrot.lane.b32.xlu0 %v1558, 127
        %v1579 = vpop.permute.xlu0 %1578
        %1580 = vrot.lane.b32.xlu0 %v1559, 127
        %v1581 = vpop.permute.xlu0 %1580
        %1582 = vrot.lane.b32.xlu0 %v1560, 127
        %v1583 = vpop.permute.xlu0 %1582
        %1584 = vrot.lane.b32.xlu0 %v1561, 127
        %v1585 = vpop.permute.xlu0 %1584
        %v1594 = vcombine.low %v1571, %v1579
        %v1595 = vcombine.high %v1571, %v1579
        %v1597 = vunpack.c.l.s4 1983009808
        %v1598 = vunpack.c.0.s8 %v1597
        %v1599 = vlaneseq
        %v1600 = vshrl.u32 %v1599, 7
        %v1601 = vsub.s32 %v1598, %v1600
        %v1602 = vrot.slane %v1594, %v1601
        %v1604 = vunpack.c.l.s4 1983009808
        %v1605 = vunpack.c.0.s8 %v1604
        %v1606 = vlaneseq
        %v1607 = vshrl.u32 %v1606, 7
        %v1608 = vsub.s32 %v1605, %v1607
        %v1609 = vrot.slane %v1595, %v1608
        %v1610 = vcombine.low %v1575, %v1583
        %v1611 = vcombine.high %v1575, %v1583
        %v1613 = vunpack.c.l.s4 1983009808
        %v1614 = vunpack.c.0.s8 %v1613
        %v1615 = vlaneseq
        %v1616 = vshrl.u32 %v1615, 7
        %v1617 = vsub.s32 %v1614, %v1616
        %v1618 = vrot.slane %v1610, %v1617
        %v1620 = vunpack.c.l.s4 1983009808
        %v1621 = vunpack.c.0.s8 %v1620
        %v1622 = vlaneseq
        %v1623 = vshrl.u32 %v1622, 7
        %v1624 = vsub.s32 %v1621, %v1623
        %v1625 = vrot.slane %v1611, %v1624
        %v1626 = vcombine.low %v1602, %v1618
        %v1627 = vcombine.high %v1602, %v1618
        %v1629 = vunpack.c.l.s4 1934713408
        %v1630 = vunpack.c.0.s8 %v1629
        %v1631 = vlaneseq
        %v1632 = vshrl.u32 %v1631, 7
        %v1633 = vsub.s32 %v1630, %v1632
        %v1634 = vrot.slane %v1626, %v1633
        %v1636 = vunpack.c.l.s4 1934713408
        %v1637 = vunpack.c.0.s8 %v1636
        %v1638 = vlaneseq
        %v1639 = vshrl.u32 %v1638, 7
        %v1640 = vsub.s32 %v1637, %v1639
        %v1641 = vrot.slane %v1627, %v1640
        %v1642 = vcombine.low %v1609, %v1625
        %v1643 = vcombine.high %v1609, %v1625
        %v1645 = vunpack.c.l.s4 1934713408
        %v1646 = vunpack.c.0.s8 %v1645
        %v1647 = vlaneseq
        %v1648 = vshrl.u32 %v1647, 7
        %v1649 = vsub.s32 %v1646, %v1648
        %v1650 = vrot.slane %v1642, %v1649
        %v1652 = vunpack.c.l.s4 1934713408
        %v1653 = vunpack.c.0.s8 %v1652
        %v1654 = vlaneseq
        %v1655 = vshrl.u32 %v1654, 7
        %v1656 = vsub.s32 %v1653, %v1655
        %v1657 = vrot.slane %v1643, %v1656
        %v1658 = vcombine.high %v1634, 0.0
        %v1659 = vcombine.high %v1641, 0.0
        %v1660 = vcombine.high %v1650, 0.0
        %v1661 = vcombine.high %v1657, 0.0
        %v1662 = vcombine.low %v1573, %v1581
        %v1663 = vcombine.high %v1573, %v1581
        %v1665 = vunpack.c.l.s4 1983009808
        %v1666 = vunpack.c.0.s8 %v1665
        %v1667 = vlaneseq
        %v1668 = vshrl.u32 %v1667, 7
        %v1669 = vsub.s32 %v1666, %v1668
        %v1670 = vrot.slane %v1662, %v1669
        %v1672 = vunpack.c.l.s4 1983009808
        %v1673 = vunpack.c.0.s8 %v1672
        %v1674 = vlaneseq
        %v1675 = vshrl.u32 %v1674, 7
        %v1676 = vsub.s32 %v1673, %v1675
        %v1677 = vrot.slane %v1663, %v1676
        %v1678 = vcombine.low %v1577, %v1585
        %v1679 = vcombine.high %v1577, %v1585
        %v1681 = vunpack.c.l.s4 1983009808
        %v1682 = vunpack.c.0.s8 %v1681
        %v1683 = vlaneseq
        %v1684 = vshrl.u32 %v1683, 7
        %v1685 = vsub.s32 %v1682, %v1684
        %v1686 = vrot.slane %v1678, %v1685
        %v1688 = vunpack.c.l.s4 1983009808
        %v1689 = vunpack.c.0.s8 %v1688
        %v1690 = vlaneseq
        %v1691 = vshrl.u32 %v1690, 7
        %v1692 = vsub.s32 %v1689, %v1691
        %v1693 = vrot.slane %v1679, %v1692
        %v1694 = vcombine.low %v1670, %v1686
        %v1695 = vcombine.high %v1670, %v1686
        %v1697 = vunpack.c.l.s4 1934713408
        %v1698 = vunpack.c.0.s8 %v1697
        %v1699 = vlaneseq
        %v1700 = vshrl.u32 %v1699, 7
        %v1701 = vsub.s32 %v1698, %v1700
        %v1702 = vrot.slane %v1694, %v1701
        %v1704 = vunpack.c.l.s4 1934713408
        %v1705 = vunpack.c.0.s8 %v1704
        %v1706 = vlaneseq
        %v1707 = vshrl.u32 %v1706, 7
        %v1708 = vsub.s32 %v1705, %v1707
        %v1709 = vrot.slane %v1695, %v1708
        %v1710 = vcombine.low %v1677, %v1693
        %v1711 = vcombine.high %v1677, %v1693
        %v1713 = vunpack.c.l.s4 1934713408
        %v1714 = vunpack.c.0.s8 %v1713
        %v1715 = vlaneseq
        %v1716 = vshrl.u32 %v1715, 7
        %v1717 = vsub.s32 %v1714, %v1716
        %v1718 = vrot.slane %v1710, %v1717
        %v1720 = vunpack.c.l.s4 1934713408
        %v1721 = vunpack.c.0.s8 %v1720
        %v1722 = vlaneseq
        %v1723 = vshrl.u32 %v1722, 7
        %v1724 = vsub.s32 %v1721, %v1723
        %v1725 = vrot.slane %v1711, %v1724
        %v1726 = vcombine.high %v1702, 0.0
        %v1727 = vcombine.high %v1709, 0.0
        %v1728 = vcombine.high %v1718, 0.0
        %v1729 = vcombine.high %v1725, 0.0
        %1731 = vrot.lane.b32.xlu0 %v1658, 16
        %v1732 = vpop.permute.xlu0 %1731
        %1735 = vrot.lane.b32.xlu0 %v1641, 32
        %v1736 = vpop.permute.xlu0 %1735
        %1739 = vrot.lane.b32.xlu0 %v1659, 48
        %v1740 = vpop.permute.xlu0 %1739
        %1743 = vrot.lane.b32.xlu0 %v1650, 64
        %v1744 = vpop.permute.xlu0 %1743
        %1747 = vrot.lane.b32.xlu0 %v1660, 80
        %v1748 = vpop.permute.xlu0 %1747
        %1751 = vrot.lane.b32.xlu0 %v1657, 96
        %v1752 = vpop.permute.xlu0 %1751
        %1755 = vrot.lane.b32.xlu0 %v1661, 112
        %v1756 = vpop.permute.xlu0 %1755
        %1759 = vrot.lane.b32.xlu0 %v1726, 16
        %v1760 = vpop.permute.xlu0 %1759
        %1763 = vrot.lane.b32.xlu0 %v1709, 32
        %v1764 = vpop.permute.xlu0 %1763
        %1767 = vrot.lane.b32.xlu0 %v1727, 48
        %v1768 = vpop.permute.xlu0 %1767
        %1771 = vrot.lane.b32.xlu0 %v1718, 64
        %v1772 = vpop.permute.xlu0 %1771
        %1775 = vrot.lane.b32.xlu0 %v1728, 80
        %v1776 = vpop.permute.xlu0 %1775
        %1779 = vrot.lane.b32.xlu0 %v1725, 96
        %v1780 = vpop.permute.xlu0 %1779
        %1783 = vrot.lane.b32.xlu0 %v1729, 112
        %v1784 = vpop.permute.xlu0 %1783
        %v1786 = vsel %vm502, %v1634, %v1732
        %v1787 = vsel %vm504, %v1786, %v1736
        %v1788 = vsel %vm506, %v1787, %v1740
        %v1789 = vsel %vm508, %v1788, %v1744
        %v1790 = vsel %vm510, %v1789, %v1748
        %v1791 = vsel %vm512, %v1790, %v1752
        %v1792 = vsel %vm514, %v1791, %v1756
        %v1793 = vsel %vm502, %v1702, %v1760
        %v1794 = vsel %vm504, %v1793, %v1764
        %v1795 = vsel %vm506, %v1794, %v1768
        %v1796 = vsel %vm508, %v1795, %v1772
        %v1797 = vsel %vm510, %v1796, %v1776
        %v1798 = vsel %vm512, %v1797, %v1780
        %v1799 = vsel %vm514, %v1798, %v1784
        %s1800 = scalar_lea.vmem %s1, 16
        %v1801 = vld [vmem:[%s1800] sm:$0xf]
        %v1803 = vsel %vm764, %v1801, 0
        %v1806 = vsel %vm768, %v1792, 0
        %v1809 = vsel %vm768, %v1799, 0
        %1811 = vmatprep.subr.mxu0 %v1809
        %1812 = vmatpush1.msra.mxu0 %v1806
        %1813 = vmatprep.subr.mxu0 0.0
        %1814 = vmatpush1.msra.mxu0 0.0
        %1815 = vmatprep.subr.mxu0 0.0
        %1816 = vmatpush1.msra.mxu0 0.0
        %1817 = vmatprep.subr.mxu0 0.0
        %1818 = vmatpush1.msra.mxu0 0.0
        %1819 = vmatprep.subr.mxu0 0.0
        %1820 = vmatpush1.msra.mxu0 0.0
        %1821 = vmatprep.subr.mxu0 0.0
        %1822 = vmatpush1.msra.mxu0 0.0
        %1823 = vmatprep.subr.mxu0 0.0
        %1824 = vmatpush1.msra.mxu0 0.0
        %1825 = vmatprep.subr.mxu0 0.0
        %1826 = vmatpush1.msra.mxu0 0.0
        %1827 = vmatprep.subr.mxu0 0.0
        %1828 = vmatpush1.msra.mxu0 0.0
        %1829 = vmatprep.subr.mxu0 0.0
        %1830 = vmatpush1.msra.mxu0 0.0
        %1831 = vmatprep.subr.mxu0 0.0
        %1832 = vmatpush1.msra.mxu0 0.0
        %1833 = vmatprep.subr.mxu0 0.0
        %1834 = vmatpush1.msra.mxu0 0.0
        %1835 = vmatprep.subr.mxu0 0.0
        %1836 = vmatpush1.msra.mxu0 0.0
        %1837 = vmatprep.subr.mxu0 0.0
        %1838 = vmatpush1.msra.mxu0 0.0
        %1839 = vmatprep.subr.mxu0 0.0
        %1840 = vmatpush1.msra.mxu0 0.0
        %1841 = vmatprep.subr.mxu0 0.0
        %1842 = vmatpush1.msra.mxu0 0.0
        %1843 = vmatprep.subr.mxu0 0.0
        %1844 = vmatpush1.msra.mxu0 0.0
        %1845 = vmatprep.subr.mxu0 0.0
        %1846 = vmatpush1.msra.mxu0 0.0
        %1847 = vmatprep.subr.mxu0 0.0
        %1848 = vmatpush1.msra.mxu0 0.0
        %1849 = vmatprep.subr.mxu0 0.0
        %1850 = vmatpush1.msra.mxu0 0.0
        %1851 = vmatprep.subr.mxu0 0.0
        %1852 = vmatpush1.msra.mxu0 0.0
        %1853 = vmatprep.subr.mxu0 0.0
        %1854 = vmatpush1.msra.mxu0 0.0
        %1855 = vmatprep.subr.mxu0 0.0
        %1856 = vmatpush1.msra.mxu0 0.0
        %1857 = vmatprep.subr.mxu0 0.0
        %1858 = vmatpush1.msra.mxu0 0.0
        %1859 = vmatprep.subr.mxu0 0.0
        %1860 = vmatpush1.msra.mxu0 0.0
        %1861 = vmatprep.subr.mxu0 0.0
        %1862 = vmatpush1.msra.mxu0 0.0
        %1863 = vmatprep.subr.mxu0 0.0
        %1864 = vmatpush1.msra.mxu0 0.0
        %1865 = vmatprep.subr.mxu0 0.0
        %1866 = vmatpush1.msra.mxu0 0.0
        %1867 = vmatprep.subr.mxu0 0.0
        %1868 = vmatpush1.msra.mxu0 0.0
        %1869 = vmatprep.subr.mxu0 0.0
        %1870 = vmatpush1.msra.mxu0 0.0
        %1871 = vmatprep.subr.mxu0 0.0
        %1872 = vmatpush1.msra.mxu0 0.0
        %1873 = vmatprep.subr.mxu0 0.0
        %1874 = vmatpush1.msra.mxu0 0.0
        %1875 = vmatprep.mubr.f32.mxu0 0.0
        %1876 = vmatmul.mubr.f32.gmra.mrb[0].mxu0 %v1803
        %v1877 = vpop.f32.mrb[0].mxu0
        %v1878 = vadd.f32 0.0, %v1877
        %v1879 = vpop.f32.mrb[0].mxu0
        %v1880 = vadd.f32 0.0, %v1879
        %1881 = vdwg.mxu0
        %v1882 = vadd.f32 %v1552, %v1878
        %v1883 = vadd.f32 %v1553, %v1880
        %v1884 = vld [vmem:[#allocation2 + $0x1] sm:$0xff]
        %v1885 = vld [vmem:[#allocation2 + $0x9] sm:$0xff]
        %v1886 = vld [vmem:[#allocation2 + $0x19] sm:$0xff]
        %v1887 = vld [vmem:[#allocation2 + $0x21] sm:$0xff]
        %v1888 = vld [vmem:[#allocation2 + $0x31] sm:$0xff]
        %v1889 = vld [vmem:[#allocation2 + $0x39] sm:$0xff]
        %v1890 = vld [vmem:[#allocation2 + $0x49] sm:$0xff]
        %v1891 = vld [vmem:[#allocation2 + $0x51] sm:$0xff]
        %1900 = vrot.lane.b32.xlu0 %v1884, 126
        %v1901 = vpop.permute.xlu0 %1900
        %1902 = vrot.lane.b32.xlu0 %v1885, 126
        %v1903 = vpop.permute.xlu0 %1902
        %1904 = vrot.lane.b32.xlu0 %v1886, 126
        %v1905 = vpop.permute.xlu0 %1904
        %1906 = vrot.lane.b32.xlu0 %v1887, 126
        %v1907 = vpop.permute.xlu0 %1906
        %1908 = vrot.lane.b32.xlu0 %v1888, 126
        %v1909 = vpop.permute.xlu0 %1908
        %1910 = vrot.lane.b32.xlu0 %v1889, 126
        %v1911 = vpop.permute.xlu0 %1910
        %1912 = vrot.lane.b32.xlu0 %v1890, 126
        %v1913 = vpop.permute.xlu0 %1912
        %1914 = vrot.lane.b32.xlu0 %v1891, 126
        %v1915 = vpop.permute.xlu0 %1914
        %v1924 = vcombine.low %v1901, %v1909
        %v1925 = vcombine.high %v1901, %v1909
        %v1927 = vunpack.c.l.s4 1983009808
        %v1928 = vunpack.c.0.s8 %v1927
        %v1929 = vlaneseq
        %v1930 = vshrl.u32 %v1929, 7
        %v1931 = vsub.s32 %v1928, %v1930
        %v1932 = vrot.slane %v1924, %v1931
        %v1934 = vunpack.c.l.s4 1983009808
        %v1935 = vunpack.c.0.s8 %v1934
        %v1936 = vlaneseq
        %v1937 = vshrl.u32 %v1936, 7
        %v1938 = vsub.s32 %v1935, %v1937
        %v1939 = vrot.slane %v1925, %v1938
        %v1940 = vcombine.low %v1905, %v1913
        %v1941 = vcombine.high %v1905, %v1913
        %v1943 = vunpack.c.l.s4 1983009808
        %v1944 = vunpack.c.0.s8 %v1943
        %v1945 = vlaneseq
        %v1946 = vshrl.u32 %v1945, 7
        %v1947 = vsub.s32 %v1944, %v1946
        %v1948 = vrot.slane %v1940, %v1947
        %v1950 = vunpack.c.l.s4 1983009808
        %v1951 = vunpack.c.0.s8 %v1950
        %v1952 = vlaneseq
        %v1953 = vshrl.u32 %v1952, 7
        %v1954 = vsub.s32 %v1951, %v1953
        %v1955 = vrot.slane %v1941, %v1954
        %v1956 = vcombine.low %v1932, %v1948
        %v1957 = vcombine.high %v1932, %v1948
        %v1959 = vunpack.c.l.s4 1934713408
        %v1960 = vunpack.c.0.s8 %v1959
        %v1961 = vlaneseq
        %v1962 = vshrl.u32 %v1961, 7
        %v1963 = vsub.s32 %v1960, %v1962
        %v1964 = vrot.slane %v1956, %v1963
        %v1966 = vunpack.c.l.s4 1934713408
        %v1967 = vunpack.c.0.s8 %v1966
        %v1968 = vlaneseq
        %v1969 = vshrl.u32 %v1968, 7
        %v1970 = vsub.s32 %v1967, %v1969
        %v1971 = vrot.slane %v1957, %v1970
        %v1972 = vcombine.low %v1939, %v1955
        %v1973 = vcombine.high %v1939, %v1955
        %v1975 = vunpack.c.l.s4 1934713408
        %v1976 = vunpack.c.0.s8 %v1975
        %v1977 = vlaneseq
        %v1978 = vshrl.u32 %v1977, 7
        %v1979 = vsub.s32 %v1976, %v1978
        %v1980 = vrot.slane %v1972, %v1979
        %v1982 = vunpack.c.l.s4 1934713408
        %v1983 = vunpack.c.0.s8 %v1982
        %v1984 = vlaneseq
        %v1985 = vshrl.u32 %v1984, 7
        %v1986 = vsub.s32 %v1983, %v1985
        %v1987 = vrot.slane %v1973, %v1986
        %v1988 = vcombine.high %v1964, 0.0
        %v1989 = vcombine.high %v1971, 0.0
        %v1990 = vcombine.high %v1980, 0.0
        %v1991 = vcombine.high %v1987, 0.0
        %v1992 = vcombine.low %v1903, %v1911
        %v1993 = vcombine.high %v1903, %v1911
        %v1995 = vunpack.c.l.s4 1983009808
        %v1996 = vunpack.c.0.s8 %v1995
        %v1997 = vlaneseq
        %v1998 = vshrl.u32 %v1997, 7
        %v1999 = vsub.s32 %v1996, %v1998
        %v2000 = vrot.slane %v1992, %v1999
        %v2002 = vunpack.c.l.s4 1983009808
        %v2003 = vunpack.c.0.s8 %v2002
        %v2004 = vlaneseq
        %v2005 = vshrl.u32 %v2004, 7
        %v2006 = vsub.s32 %v2003, %v2005
        %v2007 = vrot.slane %v1993, %v2006
        %v2008 = vcombine.low %v1907, %v1915
        %v2009 = vcombine.high %v1907, %v1915
        %v2011 = vunpack.c.l.s4 1983009808
        %v2012 = vunpack.c.0.s8 %v2011
        %v2013 = vlaneseq
        %v2014 = vshrl.u32 %v2013, 7
        %v2015 = vsub.s32 %v2012, %v2014
        %v2016 = vrot.slane %v2008, %v2015
        %v2018 = vunpack.c.l.s4 1983009808
        %v2019 = vunpack.c.0.s8 %v2018
        %v2020 = vlaneseq
        %v2021 = vshrl.u32 %v2020, 7
        %v2022 = vsub.s32 %v2019, %v2021
        %v2023 = vrot.slane %v2009, %v2022
        %v2024 = vcombine.low %v2000, %v2016
        %v2025 = vcombine.high %v2000, %v2016
        %v2027 = vunpack.c.l.s4 1934713408
        %v2028 = vunpack.c.0.s8 %v2027
        %v2029 = vlaneseq
        %v2030 = vshrl.u32 %v2029, 7
        %v2031 = vsub.s32 %v2028, %v2030
        %v2032 = vrot.slane %v2024, %v2031
        %v2034 = vunpack.c.l.s4 1934713408
        %v2035 = vunpack.c.0.s8 %v2034
        %v2036 = vlaneseq
        %v2037 = vshrl.u32 %v2036, 7
        %v2038 = vsub.s32 %v2035, %v2037
        %v2039 = vrot.slane %v2025, %v2038
        %v2040 = vcombine.low %v2007, %v2023
        %v2041 = vcombine.high %v2007, %v2023
        %v2043 = vunpack.c.l.s4 1934713408
        %v2044 = vunpack.c.0.s8 %v2043
        %v2045 = vlaneseq
        %v2046 = vshrl.u32 %v2045, 7
        %v2047 = vsub.s32 %v2044, %v2046
        %v2048 = vrot.slane %v2040, %v2047
        %v2050 = vunpack.c.l.s4 1934713408
        %v2051 = vunpack.c.0.s8 %v2050
        %v2052 = vlaneseq
        %v2053 = vshrl.u32 %v2052, 7
        %v2054 = vsub.s32 %v2051, %v2053
        %v2055 = vrot.slane %v2041, %v2054
        %v2056 = vcombine.high %v2032, 0.0
        %v2057 = vcombine.high %v2039, 0.0
        %v2058 = vcombine.high %v2048, 0.0
        %v2059 = vcombine.high %v2055, 0.0
        %2061 = vrot.lane.b32.xlu0 %v1988, 16
        %v2062 = vpop.permute.xlu0 %2061
        %2065 = vrot.lane.b32.xlu0 %v1971, 32
        %v2066 = vpop.permute.xlu0 %2065
        %2069 = vrot.lane.b32.xlu0 %v1989, 48
        %v2070 = vpop.permute.xlu0 %2069
        %2073 = vrot.lane.b32.xlu0 %v1980, 64
        %v2074 = vpop.permute.xlu0 %2073
        %2077 = vrot.lane.b32.xlu0 %v1990, 80
        %v2078 = vpop.permute.xlu0 %2077
        %2081 = vrot.lane.b32.xlu0 %v1987, 96
        %v2082 = vpop.permute.xlu0 %2081
        %2085 = vrot.lane.b32.xlu0 %v1991, 112
        %v2086 = vpop.permute.xlu0 %2085
        %2089 = vrot.lane.b32.xlu0 %v2056, 16
        %v2090 = vpop.permute.xlu0 %2089
        %2093 = vrot.lane.b32.xlu0 %v2039, 32
        %v2094 = vpop.permute.xlu0 %2093
        %2097 = vrot.lane.b32.xlu0 %v2057, 48
        %v2098 = vpop.permute.xlu0 %2097
        %2101 = vrot.lane.b32.xlu0 %v2048, 64
        %v2102 = vpop.permute.xlu0 %2101
        %2105 = vrot.lane.b32.xlu0 %v2058, 80
        %v2106 = vpop.permute.xlu0 %2105
        %2109 = vrot.lane.b32.xlu0 %v2055, 96
        %v2110 = vpop.permute.xlu0 %2109
        %2113 = vrot.lane.b32.xlu0 %v2059, 112
        %v2114 = vpop.permute.xlu0 %2113
        %v2116 = vsel %vm502, %v1964, %v2062
        %v2117 = vsel %vm504, %v2116, %v2066
        %v2118 = vsel %vm506, %v2117, %v2070
        %v2119 = vsel %vm508, %v2118, %v2074
        %v2120 = vsel %vm510, %v2119, %v2078
        %v2121 = vsel %vm512, %v2120, %v2082
        %v2122 = vsel %vm514, %v2121, %v2086
        %v2123 = vsel %vm502, %v2032, %v2090
        %v2124 = vsel %vm504, %v2123, %v2094
        %v2125 = vsel %vm506, %v2124, %v2098
        %v2126 = vsel %vm508, %v2125, %v2102
        %v2127 = vsel %vm510, %v2126, %v2106
        %v2128 = vsel %vm512, %v2127, %v2110
        %v2129 = vsel %vm514, %v2128, %v2114
        %s2130 = scalar_lea.vmem %s1, 20
        %v2131 = vld [vmem:[%s2130] sm:$0xf]
        %v2133 = vsel %vm764, %v2131, 0
        %v2136 = vsel %vm768, %v2122, 0
        %v2139 = vsel %vm768, %v2129, 0
        %2141 = vmatprep.subr.mxu0 %v2139
        %2142 = vmatpush1.msra.mxu0 %v2136
        %2143 = vmatprep.subr.mxu0 0.0
        %2144 = vmatpush1.msra.mxu0 0.0
        %2145 = vmatprep.subr.mxu0 0.0
        %2146 = vmatpush1.msra.mxu0 0.0
        %2147 = vmatprep.subr.mxu0 0.0
        %2148 = vmatpush1.msra.mxu0 0.0
        %2149 = vmatprep.subr.mxu0 0.0
        %2150 = vmatpush1.msra.mxu0 0.0
        %2151 = vmatprep.subr.mxu0 0.0
        %2152 = vmatpush1.msra.mxu0 0.0
        %2153 = vmatprep.subr.mxu0 0.0
        %2154 = vmatpush1.msra.mxu0 0.0
        %2155 = vmatprep.subr.mxu0 0.0
        %2156 = vmatpush1.msra.mxu0 0.0
        %2157 = vmatprep.subr.mxu0 0.0
        %2158 = vmatpush1.msra.mxu0 0.0
        %2159 = vmatprep.subr.mxu0 0.0
        %2160 = vmatpush1.msra.mxu0 0.0
        %2161 = vmatprep.subr.mxu0 0.0
        %2162 = vmatpush1.msra.mxu0 0.0
        %2163 = vmatprep.subr.mxu0 0.0
        %2164 = vmatpush1.msra.mxu0 0.0
        %2165 = vmatprep.subr.mxu0 0.0
        %2166 = vmatpush1.msra.mxu0 0.0
        %2167 = vmatprep.subr.mxu0 0.0
        %2168 = vmatpush1.msra.mxu0 0.0
        %2169 = vmatprep.subr.mxu0 0.0
        %2170 = vmatpush1.msra.mxu0 0.0
        %2171 = vmatprep.subr.mxu0 0.0
        %2172 = vmatpush1.msra.mxu0 0.0
        %2173 = vmatprep.subr.mxu0 0.0
        %2174 = vmatpush1.msra.mxu0 0.0
        %2175 = vmatprep.subr.mxu0 0.0
        %2176 = vmatpush1.msra.mxu0 0.0
        %2177 = vmatprep.subr.mxu0 0.0
        %2178 = vmatpush1.msra.mxu0 0.0
        %2179 = vmatprep.subr.mxu0 0.0
        %2180 = vmatpush1.msra.mxu0 0.0
        %2181 = vmatprep.subr.mxu0 0.0
        %2182 = vmatpush1.msra.mxu0 0.0
        %2183 = vmatprep.subr.mxu0 0.0
        %2184 = vmatpush1.msra.mxu0 0.0
        %2185 = vmatprep.subr.mxu0 0.0
        %2186 = vmatpush1.msra.mxu0 0.0
        %2187 = vmatprep.subr.mxu0 0.0
        %2188 = vmatpush1.msra.mxu0 0.0
        %2189 = vmatprep.subr.mxu0 0.0
        %2190 = vmatpush1.msra.mxu0 0.0
        %2191 = vmatprep.subr.mxu0 0.0
        %2192 = vmatpush1.msra.mxu0 0.0
        %2193 = vmatprep.subr.mxu0 0.0
        %2194 = vmatpush1.msra.mxu0 0.0
        %2195 = vmatprep.subr.mxu0 0.0
        %2196 = vmatpush1.msra.mxu0 0.0
        %2197 = vmatprep.subr.mxu0 0.0
        %2198 = vmatpush1.msra.mxu0 0.0
        %2199 = vmatprep.subr.mxu0 0.0
        %2200 = vmatpush1.msra.mxu0 0.0
        %2201 = vmatprep.subr.mxu0 0.0
        %2202 = vmatpush1.msra.mxu0 0.0
        %2203 = vmatprep.subr.mxu0 0.0
        %2204 = vmatpush1.msra.mxu0 0.0
        %2205 = vmatprep.mubr.f32.mxu0 0.0
        %2206 = vmatmul.mubr.f32.gmra.mrb[0].mxu0 %v2133
        %v2207 = vpop.f32.mrb[0].mxu0
        %v2208 = vadd.f32 0.0, %v2207
        %v2209 = vpop.f32.mrb[0].mxu0
        %v2210 = vadd.f32 0.0, %v2209
        %2211 = vdwg.mxu0
        %v2212 = vadd.f32 %v1882, %v2208
        %v2213 = vadd.f32 %v1883, %v2210
        %v2214 = vld [vmem:[#allocation2 + $0x2] sm:$0xff]
        %v2215 = vld [vmem:[#allocation2 + $0xa] sm:$0xff]
        %v2216 = vld [vmem:[#allocation2 + $0x1a] sm:$0xff]
        %v2217 = vld [vmem:[#allocation2 + $0x22] sm:$0xff]
        %v2218 = vld [vmem:[#allocation2 + $0x32] sm:$0xff]
        %v2219 = vld [vmem:[#allocation2 + $0x3a] sm:$0xff]
        %v2220 = vld [vmem:[#allocation2 + $0x4a] sm:$0xff]
        %v2221 = vld [vmem:[#allocation2 + $0x52] sm:$0xff]
        %v2222 = vcombine.low %v2214, %v2218
        %v2223 = vcombine.high %v2214, %v2218
        %v2225 = vunpack.c.l.s4 1983009808
        %v2226 = vunpack.c.0.s8 %v2225
        %v2227 = vlaneseq
        %v2228 = vshrl.u32 %v2227, 7
        %v2229 = vsub.s32 %v2226, %v2228
        %v2230 = vrot.slane %v2222, %v2229
        %v2232 = vunpack.c.l.s4 1983009808
        %v2233 = vunpack.c.0.s8 %v2232
        %v2234 = vlaneseq
        %v2235 = vshrl.u32 %v2234, 7
        %v2236 = vsub.s32 %v2233, %v2235
        %v2237 = vrot.slane %v2223, %v2236
        %v2238 = vcombine.low %v2216, %v2220
        %v2239 = vcombine.high %v2216, %v2220
        %v2241 = vunpack.c.l.s4 1983009808
        %v2242 = vunpack.c.0.s8 %v2241
        %v2243 = vlaneseq
        %v2244 = vshrl.u32 %v2243, 7
        %v2245 = vsub.s32 %v2242, %v2244
        %v2246 = vrot.slane %v2238, %v2245
        %v2248 = vunpack.c.l.s4 1983009808
        %v2249 = vunpack.c.0.s8 %v2248
        %v2250 = vlaneseq
        %v2251 = vshrl.u32 %v2250, 7
        %v2252 = vsub.s32 %v2249, %v2251
        %v2253 = vrot.slane %v2239, %v2252
        %v2254 = vcombine.low %v2230, %v2246
        %v2255 = vcombine.high %v2230, %v2246
        %v2257 = vunpack.c.l.s4 1934713408
        %v2258 = vunpack.c.0.s8 %v2257
        %v2259 = vlaneseq
        %v2260 = vshrl.u32 %v2259, 7
        %v2261 = vsub.s32 %v2258, %v2260
        %v2262 = vrot.slane %v2254, %v2261
        %v2264 = vunpack.c.l.s4 1934713408
        %v2265 = vunpack.c.0.s8 %v2264
        %v2266 = vlaneseq
        %v2267 = vshrl.u32 %v2266, 7
        %v2268 = vsub.s32 %v2265, %v2267
        %v2269 = vrot.slane %v2255, %v2268
        %v2270 = vcombine.low %v2237, %v2253
        %v2271 = vcombine.high %v2237, %v2253
        %v2273 = vunpack.c.l.s4 1934713408
        %v2274 = vunpack.c.0.s8 %v2273
        %v2275 = vlaneseq
        %v2276 = vshrl.u32 %v2275, 7
        %v2277 = vsub.s32 %v2274, %v2276
        %v2278 = vrot.slane %v2270, %v2277
        %v2280 = vunpack.c.l.s4 1934713408
        %v2281 = vunpack.c.0.s8 %v2280
        %v2282 = vlaneseq
        %v2283 = vshrl.u32 %v2282, 7
        %v2284 = vsub.s32 %v2281, %v2283
        %v2285 = vrot.slane %v2271, %v2284
        %v2286 = vcombine.high %v2262, 0.0
        %v2287 = vcombine.high %v2269, 0.0
        %v2288 = vcombine.high %v2278, 0.0
        %v2289 = vcombine.high %v2285, 0.0
        %v2290 = vcombine.low %v2215, %v2219
        %v2291 = vcombine.high %v2215, %v2219
        %v2293 = vunpack.c.l.s4 1983009808
        %v2294 = vunpack.c.0.s8 %v2293
        %v2295 = vlaneseq
        %v2296 = vshrl.u32 %v2295, 7
        %v2297 = vsub.s32 %v2294, %v2296
        %v2298 = vrot.slane %v2290, %v2297
        %v2300 = vunpack.c.l.s4 1983009808
        %v2301 = vunpack.c.0.s8 %v2300
        %v2302 = vlaneseq
        %v2303 = vshrl.u32 %v2302, 7
        %v2304 = vsub.s32 %v2301, %v2303
        %v2305 = vrot.slane %v2291, %v2304
        %v2306 = vcombine.low %v2217, %v2221
        %v2307 = vcombine.high %v2217, %v2221
        %v2309 = vunpack.c.l.s4 1983009808
        %v2310 = vunpack.c.0.s8 %v2309
        %v2311 = vlaneseq
        %v2312 = vshrl.u32 %v2311, 7
        %v2313 = vsub.s32 %v2310, %v2312
        %v2314 = vrot.slane %v2306, %v2313
        %v2316 = vunpack.c.l.s4 1983009808
        %v2317 = vunpack.c.0.s8 %v2316
        %v2318 = vlaneseq
        %v2319 = vshrl.u32 %v2318, 7
        %v2320 = vsub.s32 %v2317, %v2319
        %v2321 = vrot.slane %v2307, %v2320
        %v2322 = vcombine.low %v2298, %v2314
        %v2323 = vcombine.high %v2298, %v2314
        %v2325 = vunpack.c.l.s4 1934713408
        %v2326 = vunpack.c.0.s8 %v2325
        %v2327 = vlaneseq
        %v2328 = vshrl.u32 %v2327, 7
        %v2329 = vsub.s32 %v2326, %v2328
        %v2330 = vrot.slane %v2322, %v2329
        %v2332 = vunpack.c.l.s4 1934713408
        %v2333 = vunpack.c.0.s8 %v2332
        %v2334 = vlaneseq
        %v2335 = vshrl.u32 %v2334, 7
        %v2336 = vsub.s32 %v2333, %v2335
        %v2337 = vrot.slane %v2323, %v2336
        %v2338 = vcombine.low %v2305, %v2321
        %v2339 = vcombine.high %v2305, %v2321
        %v2341 = vunpack.c.l.s4 1934713408
        %v2342 = vunpack.c.0.s8 %v2341
        %v2343 = vlaneseq
        %v2344 = vshrl.u32 %v2343, 7
        %v2345 = vsub.s32 %v2342, %v2344
        %v2346 = vrot.slane %v2338, %v2345
        %v2348 = vunpack.c.l.s4 1934713408
        %v2349 = vunpack.c.0.s8 %v2348
        %v2350 = vlaneseq
        %v2351 = vshrl.u32 %v2350, 7
        %v2352 = vsub.s32 %v2349, %v2351
        %v2353 = vrot.slane %v2339, %v2352
        %v2354 = vcombine.high %v2330, 0.0
        %v2355 = vcombine.high %v2337, 0.0
        %v2356 = vcombine.high %v2346, 0.0
        %v2357 = vcombine.high %v2353, 0.0
        %2359 = vrot.lane.b32.xlu0 %v2286, 16
        %v2360 = vpop.permute.xlu0 %2359
        %2363 = vrot.lane.b32.xlu0 %v2269, 32
        %v2364 = vpop.permute.xlu0 %2363
        %2367 = vrot.lane.b32.xlu0 %v2287, 48
        %v2368 = vpop.permute.xlu0 %2367
        %2371 = vrot.lane.b32.xlu0 %v2278, 64
        %v2372 = vpop.permute.xlu0 %2371
        %2375 = vrot.lane.b32.xlu0 %v2288, 80
        %v2376 = vpop.permute.xlu0 %2375
        %2379 = vrot.lane.b32.xlu0 %v2285, 96
        %v2380 = vpop.permute.xlu0 %2379
        %2383 = vrot.lane.b32.xlu0 %v2289, 112
        %v2384 = vpop.permute.xlu0 %2383
        %2387 = vrot.lane.b32.xlu0 %v2354, 16
        %v2388 = vpop.permute.xlu0 %2387
        %2391 = vrot.lane.b32.xlu0 %v2337, 32
        %v2392 = vpop.permute.xlu0 %2391
        %2395 = vrot.lane.b32.xlu0 %v2355, 48
        %v2396 = vpop.permute.xlu0 %2395
        %2399 = vrot.lane.b32.xlu0 %v2346, 64
        %v2400 = vpop.permute.xlu0 %2399
        %2403 = vrot.lane.b32.xlu0 %v2356, 80
        %v2404 = vpop.permute.xlu0 %2403
        %2407 = vrot.lane.b32.xlu0 %v2353, 96
        %v2408 = vpop.permute.xlu0 %2407
        %2411 = vrot.lane.b32.xlu0 %v2357, 112
        %v2412 = vpop.permute.xlu0 %2411
        %v2414 = vsel %vm502, %v2262, %v2360
        %v2415 = vsel %vm504, %v2414, %v2364
        %v2416 = vsel %vm506, %v2415, %v2368
        %v2417 = vsel %vm508, %v2416, %v2372
        %v2418 = vsel %vm510, %v2417, %v2376
        %v2419 = vsel %vm512, %v2418, %v2380
        %v2420 = vsel %vm514, %v2419, %v2384
        %v2421 = vsel %vm502, %v2330, %v2388
        %v2422 = vsel %vm504, %v2421, %v2392
        %v2423 = vsel %vm506, %v2422, %v2396
        %v2424 = vsel %vm508, %v2423, %v2400
        %v2425 = vsel %vm510, %v2424, %v2404
        %v2426 = vsel %vm512, %v2425, %v2408
        %v2427 = vsel %vm514, %v2426, %v2412
        %s2428 = scalar_lea.vmem %s1, 24
        %v2429 = vld [vmem:[%s2428] sm:$0xf]
        %v2431 = vsel %vm764, %v2429, 0
        %v2434 = vsel %vm768, %v2420, 0
        %v2437 = vsel %vm768, %v2427, 0
        %2439 = vmatprep.subr.mxu0 %v2437
        %2440 = vmatpush1.msra.mxu0 %v2434
        %2441 = vmatprep.subr.mxu0 0.0
        %2442 = vmatpush1.msra.mxu0 0.0
        %2443 = vmatprep.subr.mxu0 0.0
        %2444 = vmatpush1.msra.mxu0 0.0
        %2445 = vmatprep.subr.mxu0 0.0
        %2446 = vmatpush1.msra.mxu0 0.0
        %2447 = vmatprep.subr.mxu0 0.0
        %2448 = vmatpush1.msra.mxu0 0.0
        %2449 = vmatprep.subr.mxu0 0.0
        %2450 = vmatpush1.msra.mxu0 0.0
        %2451 = vmatprep.subr.mxu0 0.0
        %2452 = vmatpush1.msra.mxu0 0.0
        %2453 = vmatprep.subr.mxu0 0.0
        %2454 = vmatpush1.msra.mxu0 0.0
        %2455 = vmatprep.subr.mxu0 0.0
        %2456 = vmatpush1.msra.mxu0 0.0
        %2457 = vmatprep.subr.mxu0 0.0
        %2458 = vmatpush1.msra.mxu0 0.0
        %2459 = vmatprep.subr.mxu0 0.0
        %2460 = vmatpush1.msra.mxu0 0.0
        %2461 = vmatprep.subr.mxu0 0.0
        %2462 = vmatpush1.msra.mxu0 0.0
        %2463 = vmatprep.subr.mxu0 0.0
        %2464 = vmatpush1.msra.mxu0 0.0
        %2465 = vmatprep.subr.mxu0 0.0
        %2466 = vmatpush1.msra.mxu0 0.0
        %2467 = vmatprep.subr.mxu0 0.0
        %2468 = vmatpush1.msra.mxu0 0.0
        %2469 = vmatprep.subr.mxu0 0.0
        %2470 = vmatpush1.msra.mxu0 0.0
        %2471 = vmatprep.subr.mxu0 0.0
        %2472 = vmatpush1.msra.mxu0 0.0
        %2473 = vmatprep.subr.mxu0 0.0
        %2474 = vmatpush1.msra.mxu0 0.0
        %2475 = vmatprep.subr.mxu0 0.0
        %2476 = vmatpush1.msra.mxu0 0.0
        %2477 = vmatprep.subr.mxu0 0.0
        %2478 = vmatpush1.msra.mxu0 0.0
        %2479 = vmatprep.subr.mxu0 0.0
        %2480 = vmatpush1.msra.mxu0 0.0
        %2481 = vmatprep.subr.mxu0 0.0
        %2482 = vmatpush1.msra.mxu0 0.0
        %2483 = vmatprep.subr.mxu0 0.0
        %2484 = vmatpush1.msra.mxu0 0.0
        %2485 = vmatprep.subr.mxu0 0.0
        %2486 = vmatpush1.msra.mxu0 0.0
        %2487 = vmatprep.subr.mxu0 0.0
        %2488 = vmatpush1.msra.mxu0 0.0
        %2489 = vmatprep.subr.mxu0 0.0
        %2490 = vmatpush1.msra.mxu0 0.0
        %2491 = vmatprep.subr.mxu0 0.0
        %2492 = vmatpush1.msra.mxu0 0.0
        %2493 = vmatprep.subr.mxu0 0.0
        %2494 = vmatpush1.msra.mxu0 0.0
        %2495 = vmatprep.subr.mxu0 0.0
        %2496 = vmatpush1.msra.mxu0 0.0
        %2497 = vmatprep.subr.mxu0 0.0
        %2498 = vmatpush1.msra.mxu0 0.0
        %2499 = vmatprep.subr.mxu0 0.0
        %2500 = vmatpush1.msra.mxu0 0.0
        %2501 = vmatprep.subr.mxu0 0.0
        %2502 = vmatpush1.msra.mxu0 0.0
        %2503 = vmatprep.mubr.f32.mxu0 0.0
        %2504 = vmatmul.mubr.f32.gmra.mrb[0].mxu0 %v2431
        %v2505 = vpop.f32.mrb[0].mxu0
        %v2506 = vadd.f32 0.0, %v2505
        %v2507 = vpop.f32.mrb[0].mxu0
        %v2508 = vadd.f32 0.0, %v2507
        %2509 = vdwg.mxu0
        %v2510 = vadd.f32 %v2212, %v2506
        %v2511 = vadd.f32 %v2213, %v2508
        %v2512 = vld [vmem:[#allocation2 + $0x2] sm:$0xff]
        %v2513 = vld [vmem:[#allocation2 + $0xa] sm:$0xff]
        %v2514 = vld [vmem:[#allocation2 + $0x1a] sm:$0xff]
        %v2515 = vld [vmem:[#allocation2 + $0x22] sm:$0xff]
        %v2516 = vld [vmem:[#allocation2 + $0x32] sm:$0xff]
        %v2517 = vld [vmem:[#allocation2 + $0x3a] sm:$0xff]
        %v2518 = vld [vmem:[#allocation2 + $0x4a] sm:$0xff]
        %v2519 = vld [vmem:[#allocation2 + $0x52] sm:$0xff]
        %2528 = vrot.lane.b32.xlu0 %v2512, 127
        %v2529 = vpop.permute.xlu0 %2528
        %2530 = vrot.lane.b32.xlu0 %v2513, 127
        %v2531 = vpop.permute.xlu0 %2530
        %2532 = vrot.lane.b32.xlu0 %v2514, 127
        %v2533 = vpop.permute.xlu0 %2532
        %2534 = vrot.lane.b32.xlu0 %v2515, 127
        %v2535 = vpop.permute.xlu0 %2534
        %2536 = vrot.lane.b32.xlu0 %v2516, 127
        %v2537 = vpop.permute.xlu0 %2536
        %2538 = vrot.lane.b32.xlu0 %v2517, 127
        %v2539 = vpop.permute.xlu0 %2538
        %2540 = vrot.lane.b32.xlu0 %v2518, 127
        %v2541 = vpop.permute.xlu0 %2540
        %2542 = vrot.lane.b32.xlu0 %v2519, 127
        %v2543 = vpop.permute.xlu0 %2542
        %v2552 = vcombine.low %v2529, %v2537
        %v2553 = vcombine.high %v2529, %v2537
        %v2555 = vunpack.c.l.s4 1983009808
        %v2556 = vunpack.c.0.s8 %v2555
        %v2557 = vlaneseq
        %v2558 = vshrl.u32 %v2557, 7
        %v2559 = vsub.s32 %v2556, %v2558
        %v2560 = vrot.slane %v2552, %v2559
        %v2562 = vunpack.c.l.s4 1983009808
        %v2563 = vunpack.c.0.s8 %v2562
        %v2564 = vlaneseq
        %v2565 = vshrl.u32 %v2564, 7
        %v2566 = vsub.s32 %v2563, %v2565
        %v2567 = vrot.slane %v2553, %v2566
        %v2568 = vcombine.low %v2533, %v2541
        %v2569 = vcombine.high %v2533, %v2541
        %v2571 = vunpack.c.l.s4 1983009808
        %v2572 = vunpack.c.0.s8 %v2571
        %v2573 = vlaneseq
        %v2574 = vshrl.u32 %v2573, 7
        %v2575 = vsub.s32 %v2572, %v2574
        %v2576 = vrot.slane %v2568, %v2575
        %v2578 = vunpack.c.l.s4 1983009808
        %v2579 = vunpack.c.0.s8 %v2578
        %v2580 = vlaneseq
        %v2581 = vshrl.u32 %v2580, 7
        %v2582 = vsub.s32 %v2579, %v2581
        %v2583 = vrot.slane %v2569, %v2582
        %v2584 = vcombine.low %v2560, %v2576
        %v2585 = vcombine.high %v2560, %v2576
        %v2587 = vunpack.c.l.s4 1934713408
        %v2588 = vunpack.c.0.s8 %v2587
        %v2589 = vlaneseq
        %v2590 = vshrl.u32 %v2589, 7
        %v2591 = vsub.s32 %v2588, %v2590
        %v2592 = vrot.slane %v2584, %v2591
        %v2594 = vunpack.c.l.s4 1934713408
        %v2595 = vunpack.c.0.s8 %v2594
        %v2596 = vlaneseq
        %v2597 = vshrl.u32 %v2596, 7
        %v2598 = vsub.s32 %v2595, %v2597
        %v2599 = vrot.slane %v2585, %v2598
        %v2600 = vcombine.low %v2567, %v2583
        %v2601 = vcombine.high %v2567, %v2583
        %v2603 = vunpack.c.l.s4 1934713408
        %v2604 = vunpack.c.0.s8 %v2603
        %v2605 = vlaneseq
        %v2606 = vshrl.u32 %v2605, 7
        %v2607 = vsub.s32 %v2604, %v2606
        %v2608 = vrot.slane %v2600, %v2607
        %v2610 = vunpack.c.l.s4 1934713408
        %v2611 = vunpack.c.0.s8 %v2610
        %v2612 = vlaneseq
        %v2613 = vshrl.u32 %v2612, 7
        %v2614 = vsub.s32 %v2611, %v2613
        %v2615 = vrot.slane %v2601, %v2614
        %v2616 = vcombine.high %v2592, 0.0
        %v2617 = vcombine.high %v2599, 0.0
        %v2618 = vcombine.high %v2608, 0.0
        %v2619 = vcombine.high %v2615, 0.0
        %v2620 = vcombine.low %v2531, %v2539
        %v2621 = vcombine.high %v2531, %v2539
        %v2623 = vunpack.c.l.s4 1983009808
        %v2624 = vunpack.c.0.s8 %v2623
        %v2625 = vlaneseq
        %v2626 = vshrl.u32 %v2625, 7
        %v2627 = vsub.s32 %v2624, %v2626
        %v2628 = vrot.slane %v2620, %v2627
        %v2630 = vunpack.c.l.s4 1983009808
        %v2631 = vunpack.c.0.s8 %v2630
        %v2632 = vlaneseq
        %v2633 = vshrl.u32 %v2632, 7
        %v2634 = vsub.s32 %v2631, %v2633
        %v2635 = vrot.slane %v2621, %v2634
        %v2636 = vcombine.low %v2535, %v2543
        %v2637 = vcombine.high %v2535, %v2543
        %v2639 = vunpack.c.l.s4 1983009808
        %v2640 = vunpack.c.0.s8 %v2639
        %v2641 = vlaneseq
        %v2642 = vshrl.u32 %v2641, 7
        %v2643 = vsub.s32 %v2640, %v2642
        %v2644 = vrot.slane %v2636, %v2643
        %v2646 = vunpack.c.l.s4 1983009808
        %v2647 = vunpack.c.0.s8 %v2646
        %v2648 = vlaneseq
        %v2649 = vshrl.u32 %v2648, 7
        %v2650 = vsub.s32 %v2647, %v2649
        %v2651 = vrot.slane %v2637, %v2650
        %v2652 = vcombine.low %v2628, %v2644
        %v2653 = vcombine.high %v2628, %v2644
        %v2655 = vunpack.c.l.s4 1934713408
        %v2656 = vunpack.c.0.s8 %v2655
        %v2657 = vlaneseq
        %v2658 = vshrl.u32 %v2657, 7
        %v2659 = vsub.s32 %v2656, %v2658
        %v2660 = vrot.slane %v2652, %v2659
        %v2662 = vunpack.c.l.s4 1934713408
        %v2663 = vunpack.c.0.s8 %v2662
        %v2664 = vlaneseq
        %v2665 = vshrl.u32 %v2664, 7
        %v2666 = vsub.s32 %v2663, %v2665
        %v2667 = vrot.slane %v2653, %v2666
        %v2668 = vcombine.low %v2635, %v2651
        %v2669 = vcombine.high %v2635, %v2651
        %v2671 = vunpack.c.l.s4 1934713408
        %v2672 = vunpack.c.0.s8 %v2671
        %v2673 = vlaneseq
        %v2674 = vshrl.u32 %v2673, 7
        %v2675 = vsub.s32 %v2672, %v2674
        %v2676 = vrot.slane %v2668, %v2675
        %v2678 = vunpack.c.l.s4 1934713408
        %v2679 = vunpack.c.0.s8 %v2678
        %v2680 = vlaneseq
        %v2681 = vshrl.u32 %v2680, 7
        %v2682 = vsub.s32 %v2679, %v2681
        %v2683 = vrot.slane %v2669, %v2682
        %v2684 = vcombine.high %v2660, 0.0
        %v2685 = vcombine.high %v2667, 0.0
        %v2686 = vcombine.high %v2676, 0.0
        %v2687 = vcombine.high %v2683, 0.0
        %2689 = vrot.lane.b32.xlu0 %v2616, 16
        %v2690 = vpop.permute.xlu0 %2689
        %2693 = vrot.lane.b32.xlu0 %v2599, 32
        %v2694 = vpop.permute.xlu0 %2693
        %2697 = vrot.lane.b32.xlu0 %v2617, 48
        %v2698 = vpop.permute.xlu0 %2697
        %2701 = vrot.lane.b32.xlu0 %v2608, 64
        %v2702 = vpop.permute.xlu0 %2701
        %2705 = vrot.lane.b32.xlu0 %v2618, 80
        %v2706 = vpop.permute.xlu0 %2705
        %2709 = vrot.lane.b32.xlu0 %v2615, 96
        %v2710 = vpop.permute.xlu0 %2709
        %2713 = vrot.lane.b32.xlu0 %v2619, 112
        %v2714 = vpop.permute.xlu0 %2713
        %2717 = vrot.lane.b32.xlu0 %v2684, 16
        %v2718 = vpop.permute.xlu0 %2717
        %2721 = vrot.lane.b32.xlu0 %v2667, 32
        %v2722 = vpop.permute.xlu0 %2721
        %2725 = vrot.lane.b32.xlu0 %v2685, 48
        %v2726 = vpop.permute.xlu0 %2725
        %2729 = vrot.lane.b32.xlu0 %v2676, 64
        %v2730 = vpop.permute.xlu0 %2729
        %2733 = vrot.lane.b32.xlu0 %v2686, 80
        %v2734 = vpop.permute.xlu0 %2733
        %2737 = vrot.lane.b32.xlu0 %v2683, 96
        %v2738 = vpop.permute.xlu0 %2737
        %2741 = vrot.lane.b32.xlu0 %v2687, 112
        %v2742 = vpop.permute.xlu0 %2741
        %v2744 = vsel %vm502, %v2592, %v2690
        %v2745 = vsel %vm504, %v2744, %v2694
        %v2746 = vsel %vm506, %v2745, %v2698
        %v2747 = vsel %vm508, %v2746, %v2702
        %v2748 = vsel %vm510, %v2747, %v2706
        %v2749 = vsel %vm512, %v2748, %v2710
        %v2750 = vsel %vm514, %v2749, %v2714
        %v2751 = vsel %vm502, %v2660, %v2718
        %v2752 = vsel %vm504, %v2751, %v2722
        %v2753 = vsel %vm506, %v2752, %v2726
        %v2754 = vsel %vm508, %v2753, %v2730
        %v2755 = vsel %vm510, %v2754, %v2734
        %v2756 = vsel %vm512, %v2755, %v2738
        %v2757 = vsel %vm514, %v2756, %v2742
        %s2758 = scalar_lea.vmem %s1, 28
        %v2759 = vld [vmem:[%s2758] sm:$0xf]
        %v2761 = vsel %vm764, %v2759, 0
        %v2764 = vsel %vm768, %v2750, 0
        %v2767 = vsel %vm768, %v2757, 0
        %2769 = vmatprep.subr.mxu0 %v2767
        %2770 = vmatpush1.msra.mxu0 %v2764
        %2771 = vmatprep.subr.mxu0 0.0
        %2772 = vmatpush1.msra.mxu0 0.0
        %2773 = vmatprep.subr.mxu0 0.0
        %2774 = vmatpush1.msra.mxu0 0.0
        %2775 = vmatprep.subr.mxu0 0.0
        %2776 = vmatpush1.msra.mxu0 0.0
        %2777 = vmatprep.subr.mxu0 0.0
        %2778 = vmatpush1.msra.mxu0 0.0
        %2779 = vmatprep.subr.mxu0 0.0
        %2780 = vmatpush1.msra.mxu0 0.0
        %2781 = vmatprep.subr.mxu0 0.0
        %2782 = vmatpush1.msra.mxu0 0.0
        %2783 = vmatprep.subr.mxu0 0.0
        %2784 = vmatpush1.msra.mxu0 0.0
        %2785 = vmatprep.subr.mxu0 0.0
        %2786 = vmatpush1.msra.mxu0 0.0
        %2787 = vmatprep.subr.mxu0 0.0
        %2788 = vmatpush1.msra.mxu0 0.0
        %2789 = vmatprep.subr.mxu0 0.0
        %2790 = vmatpush1.msra.mxu0 0.0
        %2791 = vmatprep.subr.mxu0 0.0
        %2792 = vmatpush1.msra.mxu0 0.0
        %2793 = vmatprep.subr.mxu0 0.0
        %2794 = vmatpush1.msra.mxu0 0.0
        %2795 = vmatprep.subr.mxu0 0.0
        %2796 = vmatpush1.msra.mxu0 0.0
        %2797 = vmatprep.subr.mxu0 0.0
        %2798 = vmatpush1.msra.mxu0 0.0
        %2799 = vmatprep.subr.mxu0 0.0
        %2800 = vmatpush1.msra.mxu0 0.0
        %2801 = vmatprep.subr.mxu0 0.0
        %2802 = vmatpush1.msra.mxu0 0.0
        %2803 = vmatprep.subr.mxu0 0.0
        %2804 = vmatpush1.msra.mxu0 0.0
        %2805 = vmatprep.subr.mxu0 0.0
        %2806 = vmatpush1.msra.mxu0 0.0
        %2807 = vmatprep.subr.mxu0 0.0
        %2808 = vmatpush1.msra.mxu0 0.0
        %2809 = vmatprep.subr.mxu0 0.0
        %2810 = vmatpush1.msra.mxu0 0.0
        %2811 = vmatprep.subr.mxu0 0.0
        %2812 = vmatpush1.msra.mxu0 0.0
        %2813 = vmatprep.subr.mxu0 0.0
        %2814 = vmatpush1.msra.mxu0 0.0
        %2815 = vmatprep.subr.mxu0 0.0
        %2816 = vmatpush1.msra.mxu0 0.0
        %2817 = vmatprep.subr.mxu0 0.0
        %2818 = vmatpush1.msra.mxu0 0.0
        %2819 = vmatprep.subr.mxu0 0.0
        %2820 = vmatpush1.msra.mxu0 0.0
        %2821 = vmatprep.subr.mxu0 0.0
        %2822 = vmatpush1.msra.mxu0 0.0
        %2823 = vmatprep.subr.mxu0 0.0
        %2824 = vmatpush1.msra.mxu0 0.0
        %2825 = vmatprep.subr.mxu0 0.0
        %2826 = vmatpush1.msra.mxu0 0.0
        %2827 = vmatprep.subr.mxu0 0.0
        %2828 = vmatpush1.msra.mxu0 0.0
        %2829 = vmatprep.subr.mxu0 0.0
        %2830 = vmatpush1.msra.mxu0 0.0
        %2831 = vmatprep.subr.mxu0 0.0
        %2832 = vmatpush1.msra.mxu0 0.0
        %2833 = vmatprep.mubr.f32.mxu0 0.0
        %2834 = vmatmul.mubr.f32.gmra.mrb[0].mxu0 %v2761
        %v2835 = vpop.f32.mrb[0].mxu0
        %v2836 = vadd.f32 0.0, %v2835
        %v2837 = vpop.f32.mrb[0].mxu0
        %v2838 = vadd.f32 0.0, %v2837
        %2839 = vdwg.mxu0
        %v2840 = vadd.f32 %v2510, %v2836
        %v2841 = vadd.f32 %v2511, %v2838
        %v2842 = vld [vmem:[#allocation2 + $0x2] sm:$0xff]
        %v2843 = vld [vmem:[#allocation2 + $0xa] sm:$0xff]
        %v2844 = vld [vmem:[#allocation2 + $0x1a] sm:$0xff]
        %v2845 = vld [vmem:[#allocation2 + $0x22] sm:$0xff]
        %v2846 = vld [vmem:[#allocation2 + $0x32] sm:$0xff]
        %v2847 = vld [vmem:[#allocation2 + $0x3a] sm:$0xff]
        %v2848 = vld [vmem:[#allocation2 + $0x4a] sm:$0xff]
        %v2849 = vld [vmem:[#allocation2 + $0x52] sm:$0xff]
        %2858 = vrot.lane.b32.xlu0 %v2842, 126
        %v2859 = vpop.permute.xlu0 %2858
        %2860 = vrot.lane.b32.xlu0 %v2843, 126
        %v2861 = vpop.permute.xlu0 %2860
        %2862 = vrot.lane.b32.xlu0 %v2844, 126
        %v2863 = vpop.permute.xlu0 %2862
        %2864 = vrot.lane.b32.xlu0 %v2845, 126
        %v2865 = vpop.permute.xlu0 %2864
        %2866 = vrot.lane.b32.xlu0 %v2846, 126
        %v2867 = vpop.permute.xlu0 %2866
        %2868 = vrot.lane.b32.xlu0 %v2847, 126
        %v2869 = vpop.permute.xlu0 %2868
        %2870 = vrot.lane.b32.xlu0 %v2848, 126
        %v2871 = vpop.permute.xlu0 %2870
        %2872 = vrot.lane.b32.xlu0 %v2849, 126
        %v2873 = vpop.permute.xlu0 %2872
        %v2882 = vcombine.low %v2859, %v2867
        %v2883 = vcombine.high %v2859, %v2867
        %v2885 = vunpack.c.l.s4 1983009808
        %v2886 = vunpack.c.0.s8 %v2885
        %v2887 = vlaneseq
        %v2888 = vshrl.u32 %v2887, 7
        %v2889 = vsub.s32 %v2886, %v2888
        %v2890 = vrot.slane %v2882, %v2889
        %v2892 = vunpack.c.l.s4 1983009808
        %v2893 = vunpack.c.0.s8 %v2892
        %v2894 = vlaneseq
        %v2895 = vshrl.u32 %v2894, 7
        %v2896 = vsub.s32 %v2893, %v2895
        %v2897 = vrot.slane %v2883, %v2896
        %v2898 = vcombine.low %v2863, %v2871
        %v2899 = vcombine.high %v2863, %v2871
        %v2901 = vunpack.c.l.s4 1983009808
        %v2902 = vunpack.c.0.s8 %v2901
        %v2903 = vlaneseq
        %v2904 = vshrl.u32 %v2903, 7
        %v2905 = vsub.s32 %v2902, %v2904
        %v2906 = vrot.slane %v2898, %v2905
        %v2908 = vunpack.c.l.s4 1983009808
        %v2909 = vunpack.c.0.s8 %v2908
        %v2910 = vlaneseq
        %v2911 = vshrl.u32 %v2910, 7
        %v2912 = vsub.s32 %v2909, %v2911
        %v2913 = vrot.slane %v2899, %v2912
        %v2914 = vcombine.low %v2890, %v2906
        %v2915 = vcombine.high %v2890, %v2906
        %v2917 = vunpack.c.l.s4 1934713408
        %v2918 = vunpack.c.0.s8 %v2917
        %v2919 = vlaneseq
        %v2920 = vshrl.u32 %v2919, 7
        %v2921 = vsub.s32 %v2918, %v2920
        %v2922 = vrot.slane %v2914, %v2921
        %v2924 = vunpack.c.l.s4 1934713408
        %v2925 = vunpack.c.0.s8 %v2924
        %v2926 = vlaneseq
        %v2927 = vshrl.u32 %v2926, 7
        %v2928 = vsub.s32 %v2925, %v2927
        %v2929 = vrot.slane %v2915, %v2928
        %v2930 = vcombine.low %v2897, %v2913
        %v2931 = vcombine.high %v2897, %v2913
        %v2933 = vunpack.c.l.s4 1934713408
        %v2934 = vunpack.c.0.s8 %v2933
        %v2935 = vlaneseq
        %v2936 = vshrl.u32 %v2935, 7
        %v2937 = vsub.s32 %v2934, %v2936
        %v2938 = vrot.slane %v2930, %v2937
        %v2940 = vunpack.c.l.s4 1934713408
        %v2941 = vunpack.c.0.s8 %v2940
        %v2942 = vlaneseq
        %v2943 = vshrl.u32 %v2942, 7
        %v2944 = vsub.s32 %v2941, %v2943
        %v2945 = vrot.slane %v2931, %v2944
        %v2946 = vcombine.high %v2922, 0.0
        %v2947 = vcombine.high %v2929, 0.0
        %v2948 = vcombine.high %v2938, 0.0
        %v2949 = vcombine.high %v2945, 0.0
        %v2950 = vcombine.low %v2861, %v2869
        %v2951 = vcombine.high %v2861, %v2869
        %v2953 = vunpack.c.l.s4 1983009808
        %v2954 = vunpack.c.0.s8 %v2953
        %v2955 = vlaneseq
        %v2956 = vshrl.u32 %v2955, 7
        %v2957 = vsub.s32 %v2954, %v2956
        %v2958 = vrot.slane %v2950, %v2957
        %v2960 = vunpack.c.l.s4 1983009808
        %v2961 = vunpack.c.0.s8 %v2960
        %v2962 = vlaneseq
        %v2963 = vshrl.u32 %v2962, 7
        %v2964 = vsub.s32 %v2961, %v2963
        %v2965 = vrot.slane %v2951, %v2964
        %v2966 = vcombine.low %v2865, %v2873
        %v2967 = vcombine.high %v2865, %v2873
        %v2969 = vunpack.c.l.s4 1983009808
        %v2970 = vunpack.c.0.s8 %v2969
        %v2971 = vlaneseq
        %v2972 = vshrl.u32 %v2971, 7
        %v2973 = vsub.s32 %v2970, %v2972
        %v2974 = vrot.slane %v2966, %v2973
        %v2976 = vunpack.c.l.s4 1983009808
        %v2977 = vunpack.c.0.s8 %v2976
        %v2978 = vlaneseq
        %v2979 = vshrl.u32 %v2978, 7
        %v2980 = vsub.s32 %v2977, %v2979
        %v2981 = vrot.slane %v2967, %v2980
        %v2982 = vcombine.low %v2958, %v2974
        %v2983 = vcombine.high %v2958, %v2974
        %v2985 = vunpack.c.l.s4 1934713408
        %v2986 = vunpack.c.0.s8 %v2985
        %v2987 = vlaneseq
        %v2988 = vshrl.u32 %v2987, 7
        %v2989 = vsub.s32 %v2986, %v2988
        %v2990 = vrot.slane %v2982, %v2989
        %v2992 = vunpack.c.l.s4 1934713408
        %v2993 = vunpack.c.0.s8 %v2992
        %v2994 = vlaneseq
        %v2995 = vshrl.u32 %v2994, 7
        %v2996 = vsub.s32 %v2993, %v2995
        %v2997 = vrot.slane %v2983, %v2996
        %v2998 = vcombine.low %v2965, %v2981
        %v2999 = vcombine.high %v2965, %v2981
        %v3001 = vunpack.c.l.s4 1934713408
        %v3002 = vunpack.c.0.s8 %v3001
        %v3003 = vlaneseq
        %v3004 = vshrl.u32 %v3003, 7
        %v3005 = vsub.s32 %v3002, %v3004
        %v3006 = vrot.slane %v2998, %v3005
        %v3008 = vunpack.c.l.s4 1934713408
        %v3009 = vunpack.c.0.s8 %v3008
        %v3010 = vlaneseq
        %v3011 = vshrl.u32 %v3010, 7
        %v3012 = vsub.s32 %v3009, %v3011
        %v3013 = vrot.slane %v2999, %v3012
        %v3014 = vcombine.high %v2990, 0.0
        %v3015 = vcombine.high %v2997, 0.0
        %v3016 = vcombine.high %v3006, 0.0
        %v3017 = vcombine.high %v3013, 0.0
        %3019 = vrot.lane.b32.xlu0 %v2946, 16
        %v3020 = vpop.permute.xlu0 %3019
        %3023 = vrot.lane.b32.xlu0 %v2929, 32
        %v3024 = vpop.permute.xlu0 %3023
        %3027 = vrot.lane.b32.xlu0 %v2947, 48
        %v3028 = vpop.permute.xlu0 %3027
        %3031 = vrot.lane.b32.xlu0 %v2938, 64
        %v3032 = vpop.permute.xlu0 %3031
        %3035 = vrot.lane.b32.xlu0 %v2948, 80
        %v3036 = vpop.permute.xlu0 %3035
        %3039 = vrot.lane.b32.xlu0 %v2945, 96
        %v3040 = vpop.permute.xlu0 %3039
        %3043 = vrot.lane.b32.xlu0 %v2949, 112
        %v3044 = vpop.permute.xlu0 %3043
        %3047 = vrot.lane.b32.xlu0 %v3014, 16
        %v3048 = vpop.permute.xlu0 %3047
        %3051 = vrot.lane.b32.xlu0 %v2997, 32
        %v3052 = vpop.permute.xlu0 %3051
        %3055 = vrot.lane.b32.xlu0 %v3015, 48
        %v3056 = vpop.permute.xlu0 %3055
        %3059 = vrot.lane.b32.xlu0 %v3006, 64
        %v3060 = vpop.permute.xlu0 %3059
        %3063 = vrot.lane.b32.xlu0 %v3016, 80
        %v3064 = vpop.permute.xlu0 %3063
        %3067 = vrot.lane.b32.xlu0 %v3013, 96
        %v3068 = vpop.permute.xlu0 %3067
        %3071 = vrot.lane.b32.xlu0 %v3017, 112
        %v3072 = vpop.permute.xlu0 %3071
        %v3074 = vsel %vm502, %v2922, %v3020
        %v3075 = vsel %vm504, %v3074, %v3024
        %v3076 = vsel %vm506, %v3075, %v3028
        %v3077 = vsel %vm508, %v3076, %v3032
        %v3078 = vsel %vm510, %v3077, %v3036
        %v3079 = vsel %vm512, %v3078, %v3040
        %v3080 = vsel %vm514, %v3079, %v3044
        %v3081 = vsel %vm502, %v2990, %v3048
        %v3082 = vsel %vm504, %v3081, %v3052
        %v3083 = vsel %vm506, %v3082, %v3056
        %v3084 = vsel %vm508, %v3083, %v3060
        %v3085 = vsel %vm510, %v3084, %v3064
        %v3086 = vsel %vm512, %v3085, %v3068
        %v3087 = vsel %vm514, %v3086, %v3072
        %s3088 = scalar_lea.vmem %s1, 32
        %v3089 = vld [vmem:[%s3088] sm:$0xf]
        %v3091 = vsel %vm764, %v3089, 0
        %v3094 = vsel %vm768, %v3080, 0
        %v3097 = vsel %vm768, %v3087, 0
        %3099 = vmatprep.subr.mxu0 %v3097
        %3100 = vmatpush1.msra.mxu0 %v3094
        %3101 = vmatprep.subr.mxu0 0.0
        %3102 = vmatpush1.msra.mxu0 0.0
        %3103 = vmatprep.subr.mxu0 0.0
        %3104 = vmatpush1.msra.mxu0 0.0
        %3105 = vmatprep.subr.mxu0 0.0
        %3106 = vmatpush1.msra.mxu0 0.0
        %3107 = vmatprep.subr.mxu0 0.0
        %3108 = vmatpush1.msra.mxu0 0.0
        %3109 = vmatprep.subr.mxu0 0.0
        %3110 = vmatpush1.msra.mxu0 0.0
        %3111 = vmatprep.subr.mxu0 0.0
        %3112 = vmatpush1.msra.mxu0 0.0
        %3113 = vmatprep.subr.mxu0 0.0
        %3114 = vmatpush1.msra.mxu0 0.0
        %3115 = vmatprep.subr.mxu0 0.0
        %3116 = vmatpush1.msra.mxu0 0.0
        %3117 = vmatprep.subr.mxu0 0.0
        %3118 = vmatpush1.msra.mxu0 0.0
        %3119 = vmatprep.subr.mxu0 0.0
        %3120 = vmatpush1.msra.mxu0 0.0
        %3121 = vmatprep.subr.mxu0 0.0
        %3122 = vmatpush1.msra.mxu0 0.0
        %3123 = vmatprep.subr.mxu0 0.0
        %3124 = vmatpush1.msra.mxu0 0.0
        %3125 = vmatprep.subr.mxu0 0.0
        %3126 = vmatpush1.msra.mxu0 0.0
        %3127 = vmatprep.subr.mxu0 0.0
        %3128 = vmatpush1.msra.mxu0 0.0
        %3129 = vmatprep.subr.mxu0 0.0
        %3130 = vmatpush1.msra.mxu0 0.0
        %3131 = vmatprep.subr.mxu0 0.0
        %3132 = vmatpush1.msra.mxu0 0.0
        %3133 = vmatprep.subr.mxu0 0.0
        %3134 = vmatpush1.msra.mxu0 0.0
        %3135 = vmatprep.subr.mxu0 0.0
        %3136 = vmatpush1.msra.mxu0 0.0
        %3137 = vmatprep.subr.mxu0 0.0
        %3138 = vmatpush1.msra.mxu0 0.0
        %3139 = vmatprep.subr.mxu0 0.0
        %3140 = vmatpush1.msra.mxu0 0.0
        %3141 = vmatprep.subr.mxu0 0.0
        %3142 = vmatpush1.msra.mxu0 0.0
        %3143 = vmatprep.subr.mxu0 0.0
        %3144 = vmatpush1.msra.mxu0 0.0
        %3145 = vmatprep.subr.mxu0 0.0
        %3146 = vmatpush1.msra.mxu0 0.0
        %3147 = vmatprep.subr.mxu0 0.0
        %3148 = vmatpush1.msra.mxu0 0.0
        %3149 = vmatprep.subr.mxu0 0.0
        %3150 = vmatpush1.msra.mxu0 0.0
        %3151 = vmatprep.subr.mxu0 0.0
        %3152 = vmatpush1.msra.mxu0 0.0
        %3153 = vmatprep.subr.mxu0 0.0
        %3154 = vmatpush1.msra.mxu0 0.0
        %3155 = vmatprep.subr.mxu0 0.0
        %3156 = vmatpush1.msra.mxu0 0.0
        %3157 = vmatprep.subr.mxu0 0.0
        %3158 = vmatpush1.msra.mxu0 0.0
        %3159 = vmatprep.subr.mxu0 0.0
        %3160 = vmatpush1.msra.mxu0 0.0
        %3161 = vmatprep.subr.mxu0 0.0
        %3162 = vmatpush1.msra.mxu0 0.0
        %3163 = vmatprep.mubr.f32.mxu0 0.0
        %3164 = vmatmul.mubr.f32.gmra.mrb[0].mxu0 %v3091
        %v3165 = vpop.f32.mrb[0].mxu0
        %v3166 = vadd.f32 0.0, %v3165
        %v3167 = vpop.f32.mrb[0].mxu0
        %v3168 = vadd.f32 0.0, %v3167
        %3169 = vdwg.mxu0
        %v3170 = vadd.f32 %v2840, %v3166
        %v3171 = vadd.f32 %v2841, %v3168
        %v3172 = vld [vmem:[%s2] sm:$0xf]
        %3174 = vset.pattern.permute.xlu0 0
        %3175 = vperm.xlu0 %3174, %v3172
        %v3176 = vpop.permute.xlu0 %3175
        %v3178 = vmul.f32 %v3170, %v3176
        %v3179 = vmul.f32 %v3171, %v3176
        %v3180 = vld [vmem:[%s3] sm:$0xf]
        %3182 = vset.pattern.permute.xlu0 0
        %3183 = vperm.xlu0 %3182, %v3180
        %v3184 = vpop.permute.xlu0 %3183
        %v3186 = vadd.f32 %v3178, %v3184
        %v3187 = vadd.f32 %v3179, %v3184
        %v3188 = vmax.f32 %v3186, 0.0
        %v3189 = vmax.f32 %v3187, 0.0
        %v3192 = vcombine.low %v3188, %v3189
        %3194 = vst [vmem:[%s215] sm:$0xff] %v3192
        %s3195 = sand.u32 %s118, 1
        %s3196 = scalar_lea.sflag [#allocation5], %s3195
        %s3197 = sand.u32 %s118, 1
        %s3198 = smul.addr %s3197, 8
        %s3199 = scalar_lea.vmem [#allocation6], %s3198
        // Predicated region
        $region41: #{tpu_custom_call.1} parent=35 // pred_check
          %p3200 = pneg %p128
        $region42: #{tpu_custom_call.1} parent=35 // pred_check_branch
          %3202 = sbr.rel (%p3200) target = $region44
        $region43: #{tpu_custom_call.1} parent=35 // pred_region
          %s3204 = ssub.s32 128, 128
          %3205 = vsyncadd %s3196, %s3204
          %s3206 = smul.addr %s21, 2
          %s3207 = smul.addr %s3206, 64
          %s3208 = scalar_lea.hbm %s4, %s3207
          %s3210 = sshll.u32 %s3199, 4
          %s3211 = int_to_ptr.vmem [resolvable:$true] %s3210
          %3213 = dma.vmem_to_hbm [thread:$0]  %s3211, 128, %s3208, %s3196
        $region44: #{tpu_custom_call.1} parent=35 // pred_fallthru
          _
      $region36: #{tpu_custom_call.1} parent=5 // pred_fallthru
        _
      %p3214 = scmp.le.s32.totalorder 2, %s16
      // Predicated region
      $region45: #{tpu_custom_call.1} parent=5 // pred_check
        %p3215 = pneg %p3214
      $region46: #{tpu_custom_call.1} parent=5 // pred_check_branch
        %3217 = sbr.rel (%p3215) target = $region48
      $region47: #{tpu_custom_call.1} parent=5 // pred_region
        %s3218 = ssub.s32 %s16, 2
        // Predicated region
        $region49: #{tpu_custom_call.1} parent=47 // pred_check
          %p3219 = pneg %p134
        $region50: #{tpu_custom_call.1} parent=47 // pred_check_branch
          %3221 = sbr.rel (%p3219) target = $region52
        $region51: #{tpu_custom_call.1} parent=47 // pred_region
          %s3222 = sand.u32 %s119, 1
          %s3223 = scalar_lea.sflag [#allocation5], %s3222
          %s3224 = sand.u32 %s119, 1
          %s3225 = smul.addr %s3224, 8
          %s3226 = scalar_lea.vmem [#allocation6], %s3225
          %3227 = dma.done %s3223, 128
        $region52: #{tpu_custom_call.1} parent=47 // pred_fallthru
          _
      $region48: #{tpu_custom_call.1} parent=5 // pred_fallthru
        _
    $region6: #{tpu_custom_call.1} parent=1 // loop_footer
      %s20 = sadd.s32 1, %s16
    $region7: #{tpu_custom_call.1} parent=1 // loop_footer_branch
      %15 = sbr.rel target = $region3
    $region8: #{tpu_custom_call.1} parent=1 // loop_exit
      _
    %3228 = vsyncpa [#allocation4], 1
    %s3229 = scalar_lea.sflag [#allocation4], 1
    %3230 = vsyncpa %s3229, 1
    %3231 = vsyncpa [#allocation5], 1
    %s3232 = scalar_lea.sflag [#allocation5], 1
    %3233 = vsyncpa %s3232, 1

</llo_original>
